<compile_context>
chip_gen: v7x
topology: tpu7x:2x2x1
jax: 0.10.0
libtpu: 0.0.40
codegen_flags: <defaults>
</compile_context>

<pallas_src>
import functools

import jax
import jax.numpy as jnp
from jax.experimental import pallas as pl
from jax.experimental.pallas import tpu as pltpu

EPS = 1e-5                    # nn.LayerNorm default eps
LANE = 128                    # TPU lane width
VMEM_LIMIT = 48 * 1024 * 1024  # explicit scoped-VMEM budget (v7x-safe)


def _round_up(x, m):
    return (x + m - 1) // m * m


# ----------------------------------------------------------------------------
# In-kernel epilogue: positional norm (LayerNorm over the channel axis) on a
# lane-padded channel axis.  Padded channels of `y` are exactly zero and
# gamma/beta/bias are zero-padded, so sums over the padded axis equal sums
# over the true channels; we just divide by the true channel count and mask
# the variance term.
# ----------------------------------------------------------------------------
def _pono(y, g, b, c_true):
    lane = jax.lax.broadcasted_iota(jnp.int32, y.shape, dimension=1)
    mask = lane < c_true
    inv_c = 1.0 / c_true
    mean = jnp.sum(y, axis=-1, keepdims=True) * inv_c
    diff = jnp.where(mask, y - mean, 0.0)
    var = jnp.sum(diff * diff, axis=-1, keepdims=True) * inv_c
    return diff * jax.lax.rsqrt(var + EPS) * g + b


# ----------------------------------------------------------------------------
# Pallas kernels (each grid step produces one (TM, C_PAD) output tile)
# ----------------------------------------------------------------------------
def conv_pono_relu_kernel(p_ref, w_ref, b_ref, g_ref, be_ref, o_ref, *, c_true):
    """out = relu(PONO(patches @ W + bias))  -- first 3x3 conv of the block."""
    y = jnp.dot(p_ref[...], w_ref[...], preferred_element_type=jnp.float32)
    y = _pono(y + b_ref[...], g_ref[...], be_ref[...], c_true)
    o_ref[...] = jnp.maximum(y, 0.0).astype(o_ref.dtype)


def conv_pono_proj_add_relu_kernel(p_ref, w_ref, b_ref, g_ref, be_ref,
                                   xs_ref, wid_ref, bid_ref, o_ref, *, c_true):
    """out = relu(PONO(p @ W + b) + (x_short @ Wid + bid))  (projection path)."""
    y = jnp.dot(p_ref[...], w_ref[...], preferred_element_type=jnp.float32)
    y = _pono(y + b_ref[...], g_ref[...], be_ref[...], c_true)
    sc = jnp.dot(xs_ref[...], wid_ref[...], preferred_element_type=jnp.float32)
    o_ref[...] = jnp.maximum(y + sc + bid_ref[...], 0.0).astype(o_ref.dtype)


def conv_pono_idadd_relu_kernel(p_ref, w_ref, b_ref, g_ref, be_ref,
                                xs_ref, o_ref, *, c_true):
    """out = relu(PONO(p @ W + b) + x_short)  (identity path, no eye matmul)."""
    y = jnp.dot(p_ref[...], w_ref[...], preferred_element_type=jnp.float32)
    y = _pono(y + b_ref[...], g_ref[...], be_ref[...], c_true)
    o_ref[...] = jnp.maximum(y + xs_ref[...], 0.0).astype(o_ref.dtype)


# ----------------------------------------------------------------------------
# pallas_call wrappers: grid over the M (row) axis, resident weights/params
# ----------------------------------------------------------------------------
def _compiler_params():
    return pltpu.CompilerParams(dimension_semantics=("parallel",),
                                vmem_limit_bytes=VMEM_LIMIT)


def _row_spec(tm, width):
    # row-tiled operand: block i covers rows [i*tm, (i+1)*tm)
    return pl.BlockSpec((tm, width), lambda i: (i, 0))


def _full_spec(shape):
    # resident operand: same (only) block for every grid step
    return pl.BlockSpec(shape, lambda i: (0, 0))


def _call_conv_pono_relu(patches, w, b, g, be, *, c_true, tm, out_dtype):
    m_pad, k = patches.shape
    c_pad = w.shape[1]
    kernel = functools.partial(conv_pono_relu_kernel, c_true=c_true)
    return pl.pallas_call(
        kernel,
        out_shape=jax.ShapeDtypeStruct((m_pad, c_pad), out_dtype),
        grid=(m_pad // tm,),
        in_specs=[_row_spec(tm, k), _full_spec((k, c_pad)),
                  _full_spec((1, c_pad)), _full_spec((1, c_pad)),
                  _full_spec((1, c_pad))],
        out_specs=_row_spec(tm, c_pad),
        compiler_params=_compiler_params(),
    )(patches, w, b, g, be)


def _call_conv_pono_proj_add_relu(patches, w, b, g, be, xs, wid, bid, *,
                                  c_true, tm, out_dtype):
    m_pad, k = patches.shape
    c_pad = w.shape[1]
    cin = xs.shape[1]
    kernel = functools.partial(conv_pono_proj_add_relu_kernel, c_true=c_true)
    return pl.pallas_call(
        kernel,
        out_shape=jax.ShapeDtypeStruct((m_pad, c_pad), out_dtype),
        grid=(m_pad // tm,),
        in_specs=[_row_spec(tm, k), _full_spec((k, c_pad)),
                  _full_spec((1, c_pad)), _full_spec((1, c_pad)),
                  _full_spec((1, c_pad)),
                  _row_spec(tm, cin), _full_spec((cin, c_pad)),
                  _full_spec((1, c_pad))],
        out_specs=_row_spec(tm, c_pad),
        compiler_params=_compiler_params(),
    )(patches, w, b, g, be, xs, wid, bid)


def _call_conv_pono_idadd_relu(patches, w, b, g, be, xs, *, c_true, tm,
                               out_dtype):
    m_pad, k = patches.shape
    c_pad = w.shape[1]
    kernel = functools.partial(conv_pono_idadd_relu_kernel, c_true=c_true)
    return pl.pallas_call(
        kernel,
        out_shape=jax.ShapeDtypeStruct((m_pad, c_pad), out_dtype),
        grid=(m_pad // tm,),
        in_specs=[_row_spec(tm, k), _full_spec((k, c_pad)),
                  _full_spec((1, c_pad)), _full_spec((1, c_pad)),
                  _full_spec((1, c_pad)),
                  _row_spec(tm, c_pad)],
        out_specs=_row_spec(tm, c_pad),
        compiler_params=_compiler_params(),
    )(patches, w, b, g, be, xs)


# ----------------------------------------------------------------------------
# Plain-JAX glue: im2col, weight reshapes, padding helpers
# ----------------------------------------------------------------------------
def im2col(x_nhwc, ksize, stride, pad):
    """k x k patches. Returns ((N*Ho*Wo, k*k*C), Ho, Wo). Patch channel order
    is (dy, dx, cin), matching the (KH, KW, Cin, Cout) weight reshape."""
    N, H, W, C = x_nhwc.shape
    xp = jnp.pad(x_nhwc, ((0, 0), (pad, pad), (pad, pad), (0, 0)))
    Ho = (H + 2 * pad - ksize) // stride + 1
    Wo = (W + 2 * pad - ksize) // stride + 1
    cols = []
    for dy in range(ksize):
        for dx in range(ksize):
            cols.append(xp[:, dy:dy + stride * Ho:stride,
                           dx:dx + stride * Wo:stride, :])
    patches = jnp.concatenate(cols, axis=-1)
    return patches.reshape(N * Ho * Wo, ksize * ksize * C), Ho, Wo


def _pad_cols(a, target):
    return jnp.pad(a, ((0, 0), (0, target - a.shape[1])))


def _pad_rows(a, target):
    return jnp.pad(a, ((0, target - a.shape[0]), (0, 0)))


def _w_oihw_to_mat(w_oihw, c_pad, dtype):
    """(Cout, Cin, KH, KW) -> (KH*KW*Cin, c_pad), zero-padded output cols."""
    cout, cin, kh, kw = w_oihw.shape
    w = jnp.transpose(w_oihw, (2, 3, 1, 0)).reshape(kh * kw * cin, cout)
    return _pad_cols(w, c_pad).astype(dtype)


def _vec(p, c_pad):
    return _pad_cols(p.reshape(1, -1).astype(jnp.float32), c_pad)


def _choose_tm(m):
    # large M: fixed 512-row tiles (comfortably within scoped VMEM with
    # double-buffering even at real ResNet channel counts); small M: one tile.
    return 512 if m >= 512 else _round_up(m, 16)


# ----------------------------------------------------------------------------
# ResidualBlock forward
# ----------------------------------------------------------------------------
@functools.partial(jax.jit, static_argnames=("stride", "has_proj"))
def _residual_block_impl(x_nchw, params, stride, has_proj):
    x = jnp.transpose(x_nchw, (0, 2, 3, 1)).astype(jnp.float32)   # -> NHWC
    N, H, W, Cin = x.shape
    Cout = params["w1"].shape[0]
    c_pad = _round_up(Cout, LANE)

    # --- branch conv1 (3x3, stride, pad=1) + PONO + ReLU (fused) -------------
    p1, Ho, Wo = im2col(x, 3, stride, 1)
    M = N * Ho * Wo
    tm = _choose_tm(M)
    m_pad = _round_up(M, tm)

    p1 = _pad_rows(p1, m_pad).astype(jnp.bfloat16)
    y1 = _call_conv_pono_relu(
        p1,
        _w_oihw_to_mat(params["w1"], c_pad, jnp.bfloat16),
        _vec(params["b1"], c_pad), _vec(params["g1"], c_pad),
        _vec(params["be1"], c_pad),
        c_true=Cout, tm=tm, out_dtype=jnp.bfloat16)

    # back to spatial layout (true rows/channels only) for the second im2col
    y1 = y1[:M, :Cout].reshape(N, Ho, Wo, Cout)

    # --- branch conv2 (3x3, 'same') + PONO + shortcut + add + ReLU (fused) ---
    p2, _, _ = im2col(y1, 3, 1, 1)                 # bf16 already
    p2 = _pad_rows(p2, m_pad)

    x_short = x[:, ::stride, ::stride, :].reshape(M, Cin)

    w2 = _w_oihw_to_mat(params["w2"], c_pad, jnp.bfloat16)
    b2 = _vec(params["b2"], c_pad)
    g2 = _vec(params["g2"], c_pad)
    be2 = _vec(params["be2"], c_pad)

    if has_proj:
        # 1x1 projection shortcut, fused as a second matmul in the same kernel
        wid = _w_oihw_to_mat(params["wid"], c_pad, jnp.bfloat16)   # (Cin, c_pad)
        bid = _vec(params["bid"], c_pad)
        xs = _pad_rows(x_short, m_pad).astype(jnp.bfloat16)
        y2 = _call_conv_pono_proj_add_relu(
            p2, w2, b2, g2, be2, xs, wid, bid,
            c_true=Cout, tm=tm, out_dtype=jnp.float32)
    else:
        # identity shortcut (Cin == Cout, stride == 1): add x directly,
        # no identity matmul.
        xs = _pad_rows(_pad_cols(x_short, c_pad), m_pad)           # f32 zeros pad
        y2 = _call_conv_pono_idadd_relu(
            p2, w2, b2, g2, be2, xs,
            c_true=Cout, tm=tm, out_dtype=jnp.float32)

    out = y2[:M, :Cout].reshape(N, Ho, Wo, Cout)
    return jnp.transpose(out, (0, 3, 1, 2))                        # -> NCHW


def residual_block(x_nchw, params, stride=1):
    has_proj = params.get("wid") is not None
    return _residual_block_impl(x_nchw, params, stride=stride, has_proj=has_proj)


# ----------------------------------------------------------------------------
# Reference (lax conv) mirroring the kernels' bf16-operand / f32-accumulate
# precision, used as a structural correctness check.
# ----------------------------------------------------------------------------
def residual_block_ref(x_nchw, params, stride=1):
    x = jnp.transpose(x_nchw, (0, 2, 3, 1)).astype(jnp.float32)
    dn = ("NHWC", "HWIO", "NHWC")

    def conv(h, w_oihw, b, s, pad):
        w = jnp.transpose(w_oihw, (2, 3, 1, 0))
        y = jax.lax.conv_general_dilated(
            h.astype(jnp.bfloat16), w.astype(jnp.bfloat16), (s, s), pad,
            dimension_numbers=dn, preferred_element_type=jnp.float32)
        return y + b.reshape(1, 1, 1, -1)

    def pono(y, g, b):
        m = y.mean(-1, keepdims=True)
        v = ((y - m) ** 2).mean(-1, keepdims=True)
        return (y - m) * jax.lax.rsqrt(v + EPS) * g + b

    h = conv(x, params["w1"], params["b1"], stride, [(1, 1), (1, 1)])
    h = jnp.maximum(pono(h, params["g1"], params["be1"]), 0.0)
    h = h.astype(jnp.bfloat16).astype(jnp.float32)   # kernel stores y1 as bf16
    h = conv(h, params["w2"], params["b2"], 1, [(1, 1), (1, 1)])
    h = pono(h, params["g2"], params["be2"])
    if params.get("wid") is not None:
        sc = conv(x, params["wid"], params["bid"], stride, [(0, 0), (0, 0)])
    else:
        sc = x[:, ::stride, ::stride, :]
    out = jnp.maximum(h + sc, 0.0)
    return jnp.transpose(out, (0, 3, 1, 2))


# ----------------------------------------------------------------------------
if __name__ == "__main__":
    key = jax.random.PRNGKey(0)

    def make_params(k, cin, cout, with_proj):
        ks = jax.random.split(k, 10)
        p = {
            "w1": 0.1 * jax.random.normal(ks[0], (cout, cin, 3, 3), jnp.float32),
            "b1": 0.1 * jax.random.normal(ks[1], (cout,), jnp.float32),
            "g1": 1.0 + 0.1 * jax.random.normal(ks[2], (cout,), jnp.float32),
            "be1": 0.1 * jax.random.normal(ks[3], (cout,), jnp.float32),
            "w2": 0.1 * jax.random.normal(ks[4], (cout, cout, 3, 3), jnp.float32),
            "b2": 0.1 * jax.random.normal(ks[5], (cout,), jnp.float32),
            "g2": 1.0 + 0.1 * jax.random.normal(ks[6], (cout,), jnp.float32),
            "be2": 0.1 * jax.random.normal(ks[7], (cout,), jnp.float32),
            "wid": None, "bid": None,
        }
        if with_proj:
            p["wid"] = 0.1 * jax.random.normal(ks[8], (cout, cin, 1, 1), jnp.float32)
            p["bid"] = 0.1 * jax.random.normal(ks[9], (cout,), jnp.float32)
        return p

    k1, k2, k3, k4 = jax.random.split(key, 4)

    # --- case 1: projection shortcut (in_chan != out_chan, stride = 2) -------
    N, Cin, H, W, Cout, stride = 2, 4, 16, 16, 8, 2
    params1 = make_params(k1, Cin, Cout, with_proj=True)
    x1 = jax.random.normal(k2, (N, Cin, H, W), jnp.float32)
    out1 = jax.block_until_ready(residual_block(x1, params1, stride=stride))
    ref1 = jax.block_until_ready(residual_block_ref(x1, params1, stride=stride))
    assert out1.shape == (N, Cout, H // stride, W // stride), out1.shape
    assert jnp.allclose(out1, ref1, rtol=1e-2, atol=1e-2), float(
        jnp.max(jnp.abs(out1 - ref1)))

    # --- case 2: identity shortcut (in_chan == out_chan, stride = 1) ---------
    params2 = make_params(k3, 8, 8, with_proj=False)
    x2 = jax.random.normal(k4, (2, 8, 16, 16), jnp.float32)
    out2 = jax.block_until_ready(residual_block(x2, params2, stride=1))
    ref2 = jax.block_until_ready(residual_block_ref(x2, params2, stride=1))
    assert out2.shape == (2, 8, 16, 16), out2.shape
    assert jnp.allclose(out2, ref2, rtol=1e-2, atol=1e-2), float(
        jnp.max(jnp.abs(out2 - ref2)))

    print("KERNEL_OK")
</pallas_src>

<mosaic_0001>
module attributes {stable_mosaic.version = 11 : i64} {
  func.func @conv_pono_proj_add_relu_kernel(%arg0: i32, %arg1: memref<128x72xbf16, #tpu.memory_space<vmem>>, %arg2: memref<72x128xbf16, #tpu.memory_space<vmem>>, %arg3: memref<1x128xf32, #tpu.memory_space<vmem>>, %arg4: memref<1x128xf32, #tpu.memory_space<vmem>>, %arg5: memref<1x128xf32, #tpu.memory_space<vmem>>, %arg6: memref<128x4xbf16, #tpu.memory_space<vmem>>, %arg7: memref<4x128xbf16, #tpu.memory_space<vmem>>, %arg8: memref<1x128xf32, #tpu.memory_space<vmem>>, %arg9: memref<128x128xf32, #tpu.memory_space<vmem>>) attributes {dimension_semantics = [#tpu.dimension_semantics<parallel>], iteration_bounds = array<i64: 1>, scalar_prefetch = 0 : i64, scratch_operands = 0 : i64, tpu.core_type = #tpu.core_type<tc>, window_params = [{transform_indices = @transform_0, window_bounds = array<i64: 128, 72>}, {pipeline_mode = #tpu.pipeline_mode<synchronous>, transform_indices = @transform_1, window_bounds = array<i64: 72, 128>}, {pipeline_mode = #tpu.pipeline_mode<synchronous>, transform_indices = @transform_2, window_bounds = array<i64: 1, 128>}, {pipeline_mode = #tpu.pipeline_mode<synchronous>, transform_indices = @transform_3, window_bounds = array<i64: 1, 128>}, {pipeline_mode = #tpu.pipeline_mode<synchronous>, transform_indices = @transform_4, window_bounds = array<i64: 1, 128>}, {transform_indices = @transform_5, window_bounds = array<i64: 128, 4>}, {pipeline_mode = #tpu.pipeline_mode<synchronous>, transform_indices = @transform_6, window_bounds = array<i64: 4, 128>}, {pipeline_mode = #tpu.pipeline_mode<synchronous>, transform_indices = @transform_7, window_bounds = array<i64: 1, 128>}, {transform_indices = @transform_8, window_bounds = array<i64: 128, 128>}]} {
    %c0 = arith.constant 0 : index
    %c0_0 = arith.constant 0 : index
    %0 = vector.load %arg1[%c0, %c0_0] : memref<128x72xbf16, #tpu.memory_space<vmem>>, vector<128x72xbf16>
    %c0_1 = arith.constant 0 : index
    %c0_2 = arith.constant 0 : index
    %1 = vector.load %arg2[%c0_1, %c0_2] : memref<72x128xbf16, #tpu.memory_space<vmem>>, vector<72x128xbf16>
    %cst = arith.constant dense<0.000000e+00> : vector<128x128xf32>
    %2 = tpu.matmul %0, %1, %cst {dimension_numbers = #tpu.dot_dimension_numbers<[1], [0], [0], [1], [0, 0, 1, 1], [], []>} : vector<128x72xbf16>, vector<72x128xbf16>, vector<128x128xf32> -> vector<128x128xf32>
    %c0_3 = arith.constant 0 : index
    %c0_4 = arith.constant 0 : index
    %3 = vector.load %arg3[%c0_3, %c0_4] : memref<1x128xf32, #tpu.memory_space<vmem>>, vector<1x128xf32>
    %4 = vector.broadcast %3 : vector<1x128xf32> to vector<128x128xf32>
    %5 = arith.addf %2, %4 : vector<128x128xf32>
    %c0_5 = arith.constant 0 : index
    %c0_6 = arith.constant 0 : index
    %6 = vector.load %arg4[%c0_5, %c0_6] : memref<1x128xf32, #tpu.memory_space<vmem>>, vector<1x128xf32>
    %c0_7 = arith.constant 0 : index
    %c0_8 = arith.constant 0 : index
    %7 = vector.load %arg5[%c0_7, %c0_8] : memref<1x128xf32, #tpu.memory_space<vmem>>, vector<1x128xf32>
    %8 = tpu.iota {dimensions = array<i32: 1>} : vector<128x128xi32>
    %c8_i32 = arith.constant 8 : i32
    %9 = vector.broadcast %c8_i32 : i32 to vector<128x128xi32>
    %10 = arith.cmpi slt, %8, %9 : vector<128x128xi32>
    %cst_9 = arith.constant dense<0.000000e+00> : vector<128xf32>
    %11 = vector.multi_reduction <add>, %5, %cst_9 [1] : vector<128x128xf32> to vector<128xf32>
    %12 = vector.shape_cast %11 : vector<128xf32> to vector<128x1xf32>
    %cst_10 = arith.constant 1.250000e-01 : f32
    %13 = vector.broadcast %cst_10 : f32 to vector<128x1xf32>
    %14 = arith.mulf %12, %13 : vector<128x1xf32>
    %15 = vector.broadcast %14 : vector<128x1xf32> to vector<128x128xf32>
    %16 = arith.subf %5, %15 : vector<128x128xf32>
    %cst_11 = arith.constant 0.000000e+00 : f32
    %17 = vector.broadcast %cst_11 : f32 to vector<128x128xf32>
    %18 = arith.select %10, %16, %17 : vector<128x128xi1>, vector<128x128xf32>
    %19 = arith.mulf %18, %18 : vector<128x128xf32>
    %cst_12 = arith.constant dense<0.000000e+00> : vector<128xf32>
    %20 = vector.multi_reduction <add>, %19, %cst_12 [1] : vector<128x128xf32> to vector<128xf32>
    %21 = vector.shape_cast %20 : vector<128xf32> to vector<128x1xf32>
    %cst_13 = arith.constant 1.250000e-01 : f32
    %22 = vector.broadcast %cst_13 : f32 to vector<128x1xf32>
    %23 = arith.mulf %21, %22 : vector<128x1xf32>
    %cst_14 = arith.constant 9.99999974E-6 : f32
    %24 = vector.broadcast %cst_14 : f32 to vector<128x1xf32>
    %25 = arith.addf %23, %24 : vector<128x1xf32>
    %26 = math.rsqrt %25 : vector<128x1xf32>
    %27 = vector.broadcast %26 : vector<128x1xf32> to vector<128x128xf32>
    %28 = arith.mulf %18, %27 : vector<128x128xf32>
    %29 = vector.broadcast %6 : vector<1x128xf32> to vector<128x128xf32>
    %30 = arith.mulf %28, %29 : vector<128x128xf32>
    %31 = vector.broadcast %7 : vector<1x128xf32> to vector<128x128xf32>
    %32 = arith.addf %30, %31 : vector<128x128xf32>
    %c0_15 = arith.constant 0 : index
    %c0_16 = arith.constant 0 : index
    %33 = vector.load %arg6[%c0_15, %c0_16] : memref<128x4xbf16, #tpu.memory_space<vmem>>, vector<128x4xbf16>
    %c0_17 = arith.constant 0 : index
    %c0_18 = arith.constant 0 : index
    %34 = vector.load %arg7[%c0_17, %c0_18] : memref<4x128xbf16, #tpu.memory_space<vmem>>, vector<4x128xbf16>
    %cst_19 = arith.constant dense<0.000000e+00> : vector<128x128xf32>
    %35 = tpu.matmul %33, %34, %cst_19 {dimension_numbers = #tpu.dot_dimension_numbers<[1], [0], [0], [1], [0, 0, 1, 1], [], []>} : vector<128x4xbf16>, vector<4x128xbf16>, vector<128x128xf32> -> vector<128x128xf32>
    %36 = arith.addf %32, %35 : vector<128x128xf32>
    %c0_20 = arith.constant 0 : index
    %c0_21 = arith.constant 0 : index
    %37 = vector.load %arg8[%c0_20, %c0_21] : memref<1x128xf32, #tpu.memory_space<vmem>>, vector<1x128xf32>
    %38 = vector.broadcast %37 : vector<1x128xf32> to vector<128x128xf32>
    %39 = arith.addf %36, %38 : vector<128x128xf32>
    %cst_22 = arith.constant 0.000000e+00 : f32
    %40 = vector.broadcast %cst_22 : f32 to vector<128x128xf32>
    %41 = arith.maximumf %39, %40 : vector<128x128xf32>
    %c0_23 = arith.constant 0 : index
    %c0_24 = arith.constant 0 : index
    %42 = vector.load %arg9[%c0_23, %c0_24] : memref<128x128xf32, #tpu.memory_space<vmem>>, vector<128x128xf32>
    tpu.vector_store %arg9[%c0_23, %c0_24], %41 {strides = array<i32>} : memref<128x128xf32, #tpu.memory_space<vmem>>, vector<128x128xf32>,
    return
  }
  func.func @transform_0(%arg0: i32) -> (i32, i32) {
    %c0_i32 = arith.constant 0 : i32
    %c0_i32_0 = arith.constant 0 : i32
    return %arg0, %c0_i32 : i32, i32
  }
  func.func @transform_1(%arg0: i32) -> (i32, i32) {
    %c0_i32 = arith.constant 0 : i32
    %c0_i32_0 = arith.constant 0 : i32
    %c0_i32_1 = arith.constant 0 : i32
    return %c0_i32, %c0_i32_0 : i32, i32
  }
  func.func @transform_2(%arg0: i32) -> (i32, i32) {
    %c0_i32 = arith.constant 0 : i32
    %c0_i32_0 = arith.constant 0 : i32
    %c0_i32_1 = arith.constant 0 : i32
    return %c0_i32, %c0_i32_0 : i32, i32
  }
  func.func @transform_3(%arg0: i32) -> (i32, i32) {
    %c0_i32 = arith.constant 0 : i32
    %c0_i32_0 = arith.constant 0 : i32
    %c0_i32_1 = arith.constant 0 : i32
    return %c0_i32, %c0_i32_0 : i32, i32
  }
  func.func @transform_4(%arg0: i32) -> (i32, i32) {
    %c0_i32 = arith.constant 0 : i32
    %c0_i32_0 = arith.constant 0 : i32
    %c0_i32_1 = arith.constant 0 : i32
    return %c0_i32, %c0_i32_0 : i32, i32
  }
  func.func @transform_5(%arg0: i32) -> (i32, i32) {
    %c0_i32 = arith.constant 0 : i32
    %c0_i32_0 = arith.constant 0 : i32
    return %arg0, %c0_i32 : i32, i32
  }
  func.func @transform_6(%arg0: i32) -> (i32, i32) {
    %c0_i32 = arith.constant 0 : i32
    %c0_i32_0 = arith.constant 0 : i32
    %c0_i32_1 = arith.constant 0 : i32
    return %c0_i32, %c0_i32_0 : i32, i32
  }
  func.func @transform_7(%arg0: i32) -> (i32, i32) {
    %c0_i32 = arith.constant 0 : i32
    %c0_i32_0 = arith.constant 0 : i32
    %c0_i32_1 = arith.constant 0 : i32
    return %c0_i32, %c0_i32_0 : i32, i32
  }
  func.func @transform_8(%arg0: i32) -> (i32, i32) {
    %c0_i32 = arith.constant 0 : i32
    %c0_i32_0 = arith.constant 0 : i32
    return %arg0, %c0_i32 : i32, i32
  }
}

module attributes {stable_mosaic.version = 11 : i64} {
  func.func @conv_pono_relu_kernel(%arg0: i32, %arg1: memref<128x36xbf16, #tpu.memory_space<vmem>>, %arg2: memref<36x128xbf16, #tpu.memory_space<vmem>>, %arg3: memref<1x128xf32, #tpu.memory_space<vmem>>, %arg4: memref<1x128xf32, #tpu.memory_space<vmem>>, %arg5: memref<1x128xf32, #tpu.memory_space<vmem>>, %arg6: memref<128x128xbf16, #tpu.memory_space<vmem>>) attributes {dimension_semantics = [#tpu.dimension_semantics<parallel>], iteration_bounds = array<i64: 1>, scalar_prefetch = 0 : i64, scratch_operands = 0 : i64, tpu.core_type = #tpu.core_type<tc>, window_params = [{transform_indices = @transform_0, window_bounds = array<i64: 128, 36>}, {pipeline_mode = #tpu.pipeline_mode<synchronous>, transform_indices = @transform_1, window_bounds = array<i64: 36, 128>}, {pipeline_mode = #tpu.pipeline_mode<synchronous>, transform_indices = @transform_2, window_bounds = array<i64: 1, 128>}, {pipeline_mode = #tpu.pipeline_mode<synchronous>, transform_indices = @transform_3, window_bounds = array<i64: 1, 128>}, {pipeline_mode = #tpu.pipeline_mode<synchronous>, transform_indices = @transform_4, window_bounds = array<i64: 1, 128>}, {transform_indices = @transform_5, window_bounds = array<i64: 128, 128>}]} {
    %c0 = arith.constant 0 : index
    %c0_0 = arith.constant 0 : index
    %0 = vector.load %arg1[%c0, %c0_0] : memref<128x36xbf16, #tpu.memory_space<vmem>>, vector<128x36xbf16>
    %c0_1 = arith.constant 0 : index
    %c0_2 = arith.constant 0 : index
    %1 = vector.load %arg2[%c0_1, %c0_2] : memref<36x128xbf16, #tpu.memory_space<vmem>>, vector<36x128xbf16>
    %cst = arith.constant dense<0.000000e+00> : vector<128x128xf32>
    %2 = tpu.matmul %0, %1, %cst {dimension_numbers = #tpu.dot_dimension_numbers<[1], [0], [0], [1], [0, 0, 1, 1], [], []>} : vector<128x36xbf16>, vector<36x128xbf16>, vector<128x128xf32> -> vector<128x128xf32>
    %c0_3 = arith.constant 0 : index
    %c0_4 = arith.constant 0 : index
    %3 = vector.load %arg3[%c0_3, %c0_4] : memref<1x128xf32, #tpu.memory_space<vmem>>, vector<1x128xf32>
    %4 = vector.broadcast %3 : vector<1x128xf32> to vector<128x128xf32>
    %5 = arith.addf %2, %4 : vector<128x128xf32>
    %c0_5 = arith.constant 0 : index
    %c0_6 = arith.constant 0 : index
    %6 = vector.load %arg4[%c0_5, %c0_6] : memref<1x128xf32, #tpu.memory_space<vmem>>, vector<1x128xf32>
    %c0_7 = arith.constant 0 : index
    %c0_8 = arith.constant 0 : index
    %7 = vector.load %arg5[%c0_7, %c0_8] : memref<1x128xf32, #tpu.memory_space<vmem>>, vector<1x128xf32>
    %8 = tpu.iota {dimensions = array<i32: 1>} : vector<128x128xi32>
    %c8_i32 = arith.constant 8 : i32
    %9 = vector.broadcast %c8_i32 : i32 to vector<128x128xi32>
    %10 = arith.cmpi slt, %8, %9 : vector<128x128xi32>
    %cst_9 = arith.constant dense<0.000000e+00> : vector<128xf32>
    %11 = vector.multi_reduction <add>, %5, %cst_9 [1] : vector<128x128xf32> to vector<128xf32>
    %12 = vector.shape_cast %11 : vector<128xf32> to vector<128x1xf32>
    %cst_10 = arith.constant 1.250000e-01 : f32
    %13 = vector.broadcast %cst_10 : f32 to vector<128x1xf32>
    %14 = arith.mulf %12, %13 : vector<128x1xf32>
    %15 = vector.broadcast %14 : vector<128x1xf32> to vector<128x128xf32>
    %16 = arith.subf %5, %15 : vector<128x128xf32>
    %cst_11 = arith.constant 0.000000e+00 : f32
    %17 = vector.broadcast %cst_11 : f32 to vector<128x128xf32>
    %18 = arith.select %10, %16, %17 : vector<128x128xi1>, vector<128x128xf32>
    %19 = arith.mulf %18, %18 : vector<128x128xf32>
    %cst_12 = arith.constant dense<0.000000e+00> : vector<128xf32>
    %20 = vector.multi_reduction <add>, %19, %cst_12 [1] : vector<128x128xf32> to vector<128xf32>
    %21 = vector.shape_cast %20 : vector<128xf32> to vector<128x1xf32>
    %cst_13 = arith.constant 1.250000e-01 : f32
    %22 = vector.broadcast %cst_13 : f32 to vector<128x1xf32>
    %23 = arith.mulf %21, %22 : vector<128x1xf32>
    %cst_14 = arith.constant 9.99999974E-6 : f32
    %24 = vector.broadcast %cst_14 : f32 to vector<128x1xf32>
    %25 = arith.addf %23, %24 : vector<128x1xf32>
    %26 = math.rsqrt %25 : vector<128x1xf32>
    %27 = vector.broadcast %26 : vector<128x1xf32> to vector<128x128xf32>
    %28 = arith.mulf %18, %27 : vector<128x128xf32>
    %29 = vector.broadcast %6 : vector<1x128xf32> to vector<128x128xf32>
    %30 = arith.mulf %28, %29 : vector<128x128xf32>
    %31 = vector.broadcast %7 : vector<1x128xf32> to vector<128x128xf32>
    %32 = arith.addf %30, %31 : vector<128x128xf32>
    %cst_15 = arith.constant 0.000000e+00 : f32
    %33 = vector.broadcast %cst_15 : f32 to vector<128x128xf32>
    %34 = arith.maximumf %32, %33 : vector<128x128xf32>
    %35 = arith.truncf %34 : vector<128x128xf32> to vector<128x128xbf16>
    %c0_16 = arith.constant 0 : index
    %c0_17 = arith.constant 0 : index
    %36 = vector.load %arg6[%c0_16, %c0_17] : memref<128x128xbf16, #tpu.memory_space<vmem>>, vector<128x128xbf16>
    tpu.vector_store %arg6[%c0_16, %c0_17], %35 {strides = array<i32>} : memref<128x128xbf16, #tpu.memory_space<vmem>>, vector<128x128xbf16>,
    return
  }
  func.func @transform_0(%arg0: i32) -> (i32, i32) {
    %c0_i32 = arith.constant 0 : i32
    %c0_i32_0 = arith.constant 0 : i32
    return %arg0, %c0_i32 : i32, i32
  }
  func.func @transform_1(%arg0: i32) -> (i32, i32) {
    %c0_i32 = arith.constant 0 : i32
    %c0_i32_0 = arith.constant 0 : i32
    %c0_i32_1 = arith.constant 0 : i32
    return %c0_i32, %c0_i32_0 : i32, i32
  }
  func.func @transform_2(%arg0: i32) -> (i32, i32) {
    %c0_i32 = arith.constant 0 : i32
    %c0_i32_0 = arith.constant 0 : i32
    %c0_i32_1 = arith.constant 0 : i32
    return %c0_i32, %c0_i32_0 : i32, i32
  }
  func.func @transform_3(%arg0: i32) -> (i32, i32) {
    %c0_i32 = arith.constant 0 : i32
    %c0_i32_0 = arith.constant 0 : i32
    %c0_i32_1 = arith.constant 0 : i32
    return %c0_i32, %c0_i32_0 : i32, i32
  }
  func.func @transform_4(%arg0: i32) -> (i32, i32) {
    %c0_i32 = arith.constant 0 : i32
    %c0_i32_0 = arith.constant 0 : i32
    %c0_i32_1 = arith.constant 0 : i32
    return %c0_i32, %c0_i32_0 : i32, i32
  }
  func.func @transform_5(%arg0: i32) -> (i32, i32) {
    %c0_i32 = arith.constant 0 : i32
    %c0_i32_0 = arith.constant 0 : i32
    return %arg0, %c0_i32 : i32, i32
  }
}

</mosaic_0001>

<llo_original>
// kernel: _residual_block_impl.3
$region0: #{_residual_block_impl.3}
  #allocation0 [shape = 'u32[]', space=smem, size = 0x4, offset = 0x4, fixed_abs, tag = 'smem constant byte address 0x4 - core index']
  #allocation1 [shape = 'u32[144,128]{1,0:T(1,128)}', space=vmem, size = 0x12000, scoped, tag = 'internal scratch']
  %s0 = inlined_call_operand.vmem [shape: bf16[128,72], index: 0, kind: input, shape index: {}]
  %s1 = inlined_call_operand.vmem [shape: bf16[72,128], index: 1, kind: input, shape index: {}]
  %s2 = inlined_call_operand.vmem [shape: f32[1,128], index: 2, kind: input, shape index: {}]
  %s3 = inlined_call_operand.vmem [shape: f32[1,128], index: 3, kind: input, shape index: {}]
  %s4 = inlined_call_operand.vmem [shape: f32[1,128], index: 4, kind: input, shape index: {}]
  %s5 = inlined_call_operand.vmem [shape: bf16[128,4], index: 5, kind: input, shape index: {}]
  %s6 = inlined_call_operand.vmem [shape: bf16[4,128], index: 6, kind: input, shape index: {}]
  %s7 = inlined_call_operand.vmem [shape: f32[1,128], index: 7, kind: input, shape index: {}]
  %s8 = inlined_call_operand.vmem [shape: f32[128,128], index: 8, kind: output, shape index: {}]
  %s9 = sld [smem:[#allocation0]]
  $region42: #{_residual_block_impl.3} parent=0
    _
  %s11 = ssub.s32 1, %s9
  %s12 = scalar_select 0, %s11, %s9
  // Predicated region
  $region2: #{_residual_block_impl.3} parent=0 // pred_check
    _
  $region3: #{_residual_block_impl.3} parent=0 // pred_check_branch
    %14 = sbr.rel (0) target = $region5
  $region4: #{_residual_block_impl.3} parent=0 // pred_region
    _
  $region5: #{_residual_block_impl.3} parent=0 // pred_fallthru
    _
  // Predicated region
  $region6: #{_residual_block_impl.3} parent=0 // pred_check
    _
  $region7: #{_residual_block_impl.3} parent=0 // pred_check_branch
    %16 = sbr.rel (0) target = $region9
  $region8: #{_residual_block_impl.3} parent=0 // pred_region
    _
  $region9: #{_residual_block_impl.3} parent=0 // pred_fallthru
    _
  // Predicated region
  $region10: #{_residual_block_impl.3} parent=0 // pred_check
    _
  $region11: #{_residual_block_impl.3} parent=0 // pred_check_branch
    %18 = sbr.rel (0) target = $region13
  $region12: #{_residual_block_impl.3} parent=0 // pred_region
    _
  $region13: #{_residual_block_impl.3} parent=0 // pred_fallthru
    _
  // Predicated region
  $region14: #{_residual_block_impl.3} parent=0 // pred_check
    _
  $region15: #{_residual_block_impl.3} parent=0 // pred_check_branch
    %20 = sbr.rel (0) target = $region17
  $region16: #{_residual_block_impl.3} parent=0 // pred_region
    _
  $region17: #{_residual_block_impl.3} parent=0 // pred_fallthru
    _
  // Predicated region
  $region18: #{_residual_block_impl.3} parent=0 // pred_check
    _
  $region19: #{_residual_block_impl.3} parent=0 // pred_check_branch
    %22 = sbr.rel (0) target = $region21
  $region20: #{_residual_block_impl.3} parent=0 // pred_region
    _
  $region21: #{_residual_block_impl.3} parent=0 // pred_fallthru
    _
  // Predicated region
  $region22: #{_residual_block_impl.3} parent=0 // pred_check
    _
  $region23: #{_residual_block_impl.3} parent=0 // pred_check_branch
    %24 = sbr.rel (0) target = $region25
  $region24: #{_residual_block_impl.3} parent=0 // pred_region
    _
  $region25: #{_residual_block_impl.3} parent=0 // pred_fallthru
    _
  // Predicated region
  $region26: #{_residual_block_impl.3} parent=0 // pred_check
    _
  $region27: #{_residual_block_impl.3} parent=0 // pred_check_branch
    %26 = sbr.rel (0) target = $region29
  $region28: #{_residual_block_impl.3} parent=0 // pred_region
    _
  $region29: #{_residual_block_impl.3} parent=0 // pred_fallthru
    _
  // Predicated region
  $region30: #{_residual_block_impl.3} parent=0 // pred_check
    _
  $region31: #{_residual_block_impl.3} parent=0 // pred_check_branch
    %28 = sbr.rel (0) target = $region33
  $region32: #{_residual_block_impl.3} parent=0 // pred_region
    _
  $region33: #{_residual_block_impl.3} parent=0 // pred_fallthru
    _
  %v30 = vld [vmem:[%s0] sm:$0xf]
  %v31 = vld [vmem:[%s0 + $0x4] sm:$0xf]
  %v32 = vld [vmem:[%s0 + $0x8] sm:$0xf]
  %v33 = vld [vmem:[%s0 + $0xc] sm:$0xf]
  %v34 = vld [vmem:[%s0 + $0x10] sm:$0xf]
  %v35 = vld [vmem:[%s0 + $0x14] sm:$0xf]
  %v36 = vld [vmem:[%s0 + $0x18] sm:$0xf]
  %v37 = vld [vmem:[%s0 + $0x1c] sm:$0xf]
  %v38 = vld [vmem:[%s0 + $0x20] sm:$0xf]
  %v39 = vld [vmem:[%s0 + $0x24] sm:$0xf]
  %v40 = vld [vmem:[%s0 + $0x28] sm:$0xf]
  %v41 = vld [vmem:[%s0 + $0x2c] sm:$0xf]
  %v42 = vld [vmem:[%s0 + $0x30] sm:$0xf]
  %v43 = vld [vmem:[%s0 + $0x34] sm:$0xf]
  %v44 = vld [vmem:[%s0 + $0x38] sm:$0xf]
  %v45 = vld [vmem:[%s0 + $0x3c] sm:$0xf]
  %v46 = vld [vmem:[%s1] sm:$0xf]
  %v47 = vld [vmem:[%s1 + $0x4] sm:$0xf]
  %v48 = vld [vmem:[%s1 + $0x8] sm:$0xf]
  %v49 = vld [vmem:[%s1 + $0xc] sm:$0xf]
  %v50 = vld [vmem:[%s1 + $0x10] sm:$0xf]
  %v51 = vld [vmem:[%s1 + $0x14] sm:$0xf]
  %v52 = vld [vmem:[%s1 + $0x18] sm:$0xf]
  %v53 = vld [vmem:[%s1 + $0x1c] sm:$0xf]
  %v54 = vld [vmem:[%s1 + $0x20] sm:$0xf]
  %v55 = vld [vmem:[%s2] sm:$0x1]
  %v57 = vlaneseq
  %v58 = vshrl.u32 %v57, 7
  %v59 = vsub.s32 0, %v58
  %v60 = vrot.slane %v55, %v59
  %v78 = vunpack.c.l.b16 %v30
  %v79 = vunpack.c.l.b16 %v31
  %v80 = vunpack.c.l.b16 %v32
  %v81 = vunpack.c.l.b16 %v33
  %v82 = vunpack.c.l.b16 %v34
  %v83 = vunpack.c.l.b16 %v35
  %v84 = vunpack.c.l.b16 %v36
  %v85 = vunpack.c.l.b16 %v37
  %v86 = vunpack.c.l.b16 %v38
  %v87 = vunpack.c.l.b16 %v39
  %v88 = vunpack.c.l.b16 %v40
  %v89 = vunpack.c.l.b16 %v41
  %v90 = vunpack.c.l.b16 %v42
  %v91 = vunpack.c.l.b16 %v43
  %v92 = vunpack.c.l.b16 %v44
  %v93 = vunpack.c.l.b16 %v45
  %v94 = vpack.c.b16 %v79, %v78
  %v95 = vpack.c.b16 %v81, %v80
  %v96 = vpack.c.b16 %v83, %v82
  %v97 = vpack.c.b16 %v85, %v84
  %v98 = vpack.c.b16 %v87, %v86
  %v99 = vpack.c.b16 %v89, %v88
  %v100 = vpack.c.b16 %v91, %v90
  %v101 = vpack.c.b16 %v93, %v92
  %v111 = vunpack.c.l.b16 %v46
  %v112 = vunpack.c.l.b16 %v47
  %v113 = vunpack.c.l.b16 %v48
  %v114 = vunpack.c.l.b16 %v49
  %v115 = vunpack.c.l.b16 %v50
  %v116 = vunpack.c.l.b16 %v51
  %v117 = vunpack.c.l.b16 %v52
  %v118 = vunpack.c.l.b16 %v53
  %v119 = vunpack.c.l.b16 %v54
  %v120 = vpack.c.b16 %v112, %v111
  %v121 = vpack.c.b16 %v114, %v113
  %v122 = vpack.c.b16 %v116, %v115
  %v123 = vpack.c.b16 %v118, %v117
  %v124 = vpack.c.b16 %v119, %v119
  %vm129 = vcmask 588800
  %v131 = vsel %vm129, %v94, 0
  %v134 = vsel %vm129, %v95, 0
  %v137 = vsel %vm129, %v96, 0
  %v140 = vsel %vm129, %v97, 0
  %v143 = vsel %vm129, %v98, 0
  %v146 = vsel %vm129, %v99, 0
  %v149 = vsel %vm129, %v100, 0
  %v152 = vsel %vm129, %v101, 0
  %vm154 = vcmask 1043456
  %v156 = vsel %vm154, %v124, 0
  %158 = vmatprep.subr.bf16.mxu0 0
  %159 = vmatpush1.bf16.msra.mxu0 %v120
  %160 = vmatprep.subr.bf16.mxu0 0
  %161 = vmatpush1.bf16.msra.mxu0 %v121
  %162 = vmatprep.subr.bf16.mxu0 0
  %163 = vmatpush1.bf16.msra.mxu0 %v122
  %164 = vmatprep.subr.bf16.mxu0 0
  %165 = vmatpush1.bf16.msra.mxu0 %v123
  %166 = vmatprep.subr.bf16.mxu0 0
  %167 = vmatpush1.bf16.msra.mxu0 %v156
  %168 = vmatprep.subr.bf16.mxu0 0
  %169 = vmatpush1.bf16.msra.mxu0 0
  %170 = vmatprep.subr.bf16.mxu0 0
  %171 = vmatpush1.bf16.msra.mxu0 0
  %172 = vmatprep.subr.bf16.mxu0 0
  %173 = vmatpush1.bf16.msra.mxu0 0
  %174 = vmatprep.subr.bf16.mxu0 0
  %175 = vmatpush1.bf16.msra.mxu0 0
  %176 = vmatprep.subr.bf16.mxu0 0
  %177 = vmatpush1.bf16.msra.mxu0 0
  %178 = vmatprep.subr.bf16.mxu0 0
  %179 = vmatpush1.bf16.msra.mxu0 0
  %180 = vmatprep.subr.bf16.mxu0 0
  %181 = vmatpush1.bf16.msra.mxu0 0
  %182 = vmatprep.subr.bf16.mxu0 0
  %183 = vmatpush1.bf16.msra.mxu0 0
  %184 = vmatprep.subr.bf16.mxu0 0
  %185 = vmatpush1.bf16.msra.mxu0 0
  %186 = vmatprep.subr.bf16.mxu0 0
  %187 = vmatpush1.bf16.msra.mxu0 0
  %188 = vmatprep.subr.bf16.mxu0 0
  %189 = vmatpush1.bf16.msra.mxu0 0
  %190 = vmatprep.mubr.bf16.mxu0 0
  %191 = vmatmul.mubr.bf16.gmra.mrb[0].mxu0 %v131
  %v192 = vpop.f32.mrb[0].mxu0
  %v193 = vadd.f32 %v60, %v192
  %v194 = vpop.f32.mrb[0].mxu0
  %v195 = vpop.f32.mrb[0].mxu0
  %v196 = vadd.f32 %v60, %v195
  %v197 = vpop.f32.mrb[0].mxu0
  %198 = vmatprep.mubr.bf16.mxu0 0
  %199 = vmatmul.mubr.bf16.gmra.mrb[0].mxu0 %v134
  %v200 = vpop.f32.mrb[0].mxu0
  %v201 = vadd.f32 %v60, %v200
  %v202 = vpop.f32.mrb[0].mxu0
  %v203 = vpop.f32.mrb[0].mxu0
  %v204 = vadd.f32 %v60, %v203
  %v205 = vpop.f32.mrb[0].mxu0
  %206 = vmatprep.mubr.bf16.mxu0 0
  %207 = vmatmul.mubr.bf16.gmra.mrb[0].mxu0 %v137
  %v208 = vpop.f32.mrb[0].mxu0
  %v209 = vadd.f32 %v60, %v208
  %v210 = vpop.f32.mrb[0].mxu0
  %v211 = vpop.f32.mrb[0].mxu0
  %v212 = vadd.f32 %v60, %v211
  %v213 = vpop.f32.mrb[0].mxu0
  %214 = vmatprep.mubr.bf16.mxu0 0
  %215 = vmatmul.mubr.bf16.gmra.mrb[0].mxu0 %v140
  %v216 = vpop.f32.mrb[0].mxu0
  %v217 = vadd.f32 %v60, %v216
  %v218 = vpop.f32.mrb[0].mxu0
  %v219 = vpop.f32.mrb[0].mxu0
  %v220 = vadd.f32 %v60, %v219
  %v221 = vpop.f32.mrb[0].mxu0
  %222 = vmatprep.mubr.bf16.mxu0 0
  %223 = vmatmul.mubr.bf16.gmra.mrb[0].mxu0 %v143
  %v224 = vpop.f32.mrb[0].mxu0
  %v225 = vadd.f32 %v60, %v224
  %v226 = vpop.f32.mrb[0].mxu0
  %v227 = vpop.f32.mrb[0].mxu0
  %v228 = vadd.f32 %v60, %v227
  %v229 = vpop.f32.mrb[0].mxu0
  %230 = vmatprep.mubr.bf16.mxu0 0
  %231 = vmatmul.mubr.bf16.gmra.mrb[0].mxu0 %v146
  %v232 = vpop.f32.mrb[0].mxu0
  %v233 = vadd.f32 %v60, %v232
  %v234 = vpop.f32.mrb[0].mxu0
  %v235 = vpop.f32.mrb[0].mxu0
  %v236 = vadd.f32 %v60, %v235
  %v237 = vpop.f32.mrb[0].mxu0
  %238 = vmatprep.mubr.bf16.mxu0 0
  %239 = vmatmul.mubr.bf16.gmra.mrb[0].mxu0 %v149
  %v240 = vpop.f32.mrb[0].mxu0
  %v241 = vadd.f32 %v60, %v240
  %v242 = vpop.f32.mrb[0].mxu0
  %v243 = vpop.f32.mrb[0].mxu0
  %v244 = vadd.f32 %v60, %v243
  %v245 = vpop.f32.mrb[0].mxu0
  %246 = vmatprep.mubr.bf16.mxu0 0
  %247 = vmatmul.mubr.bf16.gmra.mrb[0].mxu0 %v152
  %v248 = vpop.f32.mrb[0].mxu0
  %v249 = vadd.f32 %v60, %v248
  %v250 = vpop.f32.mrb[0].mxu0
  %v251 = vpop.f32.mrb[0].mxu0
  %v252 = vadd.f32 %v60, %v251
  %v253 = vpop.f32.mrb[0].mxu0
  %254 = vdwg.mxu0
  %v255 = vld [vmem:[%s3] sm:$0x1]
  %v256 = vld [vmem:[%s4] sm:$0x1]
  %v257 = vlaneseq
  %v258 = vand.u32 %v257, 127
  %vm259 = vcmp.lt.s32.totalorder %v258, 8
  %260 = vadd.xlane.f32.xlu0 %v193
  %v261 = vpop.xlane.xlu0 %260
  %262 = vadd.xlane.f32.xlu0 %v196
  %v263 = vpop.xlane.xlu0 %262
  %264 = vadd.xlane.f32.xlu0 %v201
  %v265 = vpop.xlane.xlu0 %264
  %266 = vadd.xlane.f32.xlu0 %v204
  %v267 = vpop.xlane.xlu0 %266
  %268 = vadd.xlane.f32.xlu0 %v209
  %v269 = vpop.xlane.xlu0 %268
  %270 = vadd.xlane.f32.xlu0 %v212
  %v271 = vpop.xlane.xlu0 %270
  %272 = vadd.xlane.f32.xlu0 %v217
  %v273 = vpop.xlane.xlu0 %272
  %274 = vadd.xlane.f32.xlu0 %v220
  %v275 = vpop.xlane.xlu0 %274
  %276 = vadd.xlane.f32.xlu0 %v225
  %v277 = vpop.xlane.xlu0 %276
  %278 = vadd.xlane.f32.xlu0 %v228
  %v279 = vpop.xlane.xlu0 %278
  %280 = vadd.xlane.f32.xlu0 %v233
  %v281 = vpop.xlane.xlu0 %280
  %282 = vadd.xlane.f32.xlu0 %v236
  %v283 = vpop.xlane.xlu0 %282
  %284 = vadd.xlane.f32.xlu0 %v241
  %v285 = vpop.xlane.xlu0 %284
  %286 = vadd.xlane.f32.xlu0 %v244
  %v287 = vpop.xlane.xlu0 %286
  %288 = vadd.xlane.f32.xlu0 %v249
  %v289 = vpop.xlane.xlu0 %288
  %290 = vadd.xlane.f32.xlu0 %v252
  %v291 = vpop.xlane.xlu0 %290
  %v292 = vmul.f32 %v261, 0.125
  %v293 = vmul.f32 %v263, 0.125
  %v294 = vmul.f32 %v265, 0.125
  %v295 = vmul.f32 %v267, 0.125
  %v296 = vmul.f32 %v269, 0.125
  %v297 = vmul.f32 %v271, 0.125
  %v298 = vmul.f32 %v273, 0.125
  %v299 = vmul.f32 %v275, 0.125
  %v300 = vmul.f32 %v277, 0.125
  %v301 = vmul.f32 %v279, 0.125
  %v302 = vmul.f32 %v281, 0.125
  %v303 = vmul.f32 %v283, 0.125
  %v304 = vmul.f32 %v285, 0.125
  %v305 = vmul.f32 %v287, 0.125
  %v306 = vmul.f32 %v289, 0.125
  %v307 = vmul.f32 %v291, 0.125
  %v308 = vsub.f32 %v193, %v292
  %v309 = vsub.f32 %v196, %v293
  %v310 = vsub.f32 %v201, %v294
  %v311 = vsub.f32 %v204, %v295
  %v312 = vsub.f32 %v209, %v296
  %v313 = vsub.f32 %v212, %v297
  %v314 = vsub.f32 %v217, %v298
  %v315 = vsub.f32 %v220, %v299
  %v316 = vsub.f32 %v225, %v300
  %v317 = vsub.f32 %v228, %v301
  %v318 = vsub.f32 %v233, %v302
  %v319 = vsub.f32 %v236, %v303
  %v320 = vsub.f32 %v241, %v304
  %v321 = vsub.f32 %v244, %v305
  %v322 = vsub.f32 %v249, %v306
  %v323 = vsub.f32 %v252, %v307
  %v324 = vsel %vm259, %v308, 0.0
  %v325 = vsel %vm259, %v309, 0.0
  %v326 = vsel %vm259, %v310, 0.0
  %v327 = vsel %vm259, %v311, 0.0
  %v328 = vsel %vm259, %v312, 0.0
  %v329 = vsel %vm259, %v313, 0.0
  %v330 = vsel %vm259, %v314, 0.0
  %v331 = vsel %vm259, %v315, 0.0
  %v332 = vsel %vm259, %v316, 0.0
  %v333 = vsel %vm259, %v317, 0.0
  %v334 = vsel %vm259, %v318, 0.0
  %v335 = vsel %vm259, %v319, 0.0
  %v336 = vsel %vm259, %v320, 0.0
  %v337 = vsel %vm259, %v321, 0.0
  %v338 = vsel %vm259, %v322, 0.0
  %v339 = vsel %vm259, %v323, 0.0
  %v340 = vmul.f32 %v324, %v324
  %v341 = vmul.f32 %v325, %v325
  %v342 = vmul.f32 %v326, %v326
  %v343 = vmul.f32 %v327, %v327
  %v344 = vmul.f32 %v328, %v328
  %v345 = vmul.f32 %v329, %v329
  %v346 = vmul.f32 %v330, %v330
  %v347 = vmul.f32 %v331, %v331
  %v348 = vmul.f32 %v332, %v332
  %v349 = vmul.f32 %v333, %v333
  %v350 = vmul.f32 %v334, %v334
  %v351 = vmul.f32 %v335, %v335
  %v352 = vmul.f32 %v336, %v336
  %v353 = vmul.f32 %v337, %v337
  %v354 = vmul.f32 %v338, %v338
  %v355 = vmul.f32 %v339, %v339
  %356 = vadd.xlane.f32.xlu0 %v340
  %v357 = vpop.xlane.xlu0 %356
  %358 = vadd.xlane.f32.xlu0 %v341
  %v359 = vpop.xlane.xlu0 %358
  %360 = vadd.xlane.f32.xlu0 %v342
  %v361 = vpop.xlane.xlu0 %360
  %362 = vadd.xlane.f32.xlu0 %v343
  %v363 = vpop.xlane.xlu0 %362
  %364 = vadd.xlane.f32.xlu0 %v344
  %v365 = vpop.xlane.xlu0 %364
  %366 = vadd.xlane.f32.xlu0 %v345
  %v367 = vpop.xlane.xlu0 %366
  %368 = vadd.xlane.f32.xlu0 %v346
  %v369 = vpop.xlane.xlu0 %368
  %370 = vadd.xlane.f32.xlu0 %v347
  %v371 = vpop.xlane.xlu0 %370
  %372 = vadd.xlane.f32.xlu0 %v348
  %v373 = vpop.xlane.xlu0 %372
  %374 = vadd.xlane.f32.xlu0 %v349
  %v375 = vpop.xlane.xlu0 %374
  %376 = vadd.xlane.f32.xlu0 %v350
  %v377 = vpop.xlane.xlu0 %376
  %378 = vadd.xlane.f32.xlu0 %v351
  %v379 = vpop.xlane.xlu0 %378
  %380 = vadd.xlane.f32.xlu0 %v352
  %v381 = vpop.xlane.xlu0 %380
  %382 = vadd.xlane.f32.xlu0 %v353
  %v383 = vpop.xlane.xlu0 %382
  %384 = vadd.xlane.f32.xlu0 %v354
  %v385 = vpop.xlane.xlu0 %384
  %386 = vadd.xlane.f32.xlu0 %v355
  %v387 = vpop.xlane.xlu0 %386
  %v388 = vmul.f32 %v357, 0.125
  %v389 = vmul.f32 %v359, 0.125
  %v390 = vmul.f32 %v361, 0.125
  %v391 = vmul.f32 %v363, 0.125
  %v392 = vmul.f32 %v365, 0.125
  %v393 = vmul.f32 %v367, 0.125
  %v394 = vmul.f32 %v369, 0.125
  %v395 = vmul.f32 %v371, 0.125
  %v396 = vmul.f32 %v373, 0.125
  %v397 = vmul.f32 %v375, 0.125
  %v398 = vmul.f32 %v377, 0.125
  %v399 = vmul.f32 %v379, 0.125
  %v400 = vmul.f32 %v381, 0.125
  %v401 = vmul.f32 %v383, 0.125
  %v402 = vmul.f32 %v385, 0.125
  %v403 = vmul.f32 %v387, 0.125
  %v404 = vadd.f32 %v388, 1e-05
  %v405 = vadd.f32 %v389, 1e-05
  %v406 = vadd.f32 %v390, 1e-05
  %v407 = vadd.f32 %v391, 1e-05
  %v408 = vadd.f32 %v392, 1e-05
  %v409 = vadd.f32 %v393, 1e-05
  %v410 = vadd.f32 %v394, 1e-05
  %v411 = vadd.f32 %v395, 1e-05
  %v412 = vadd.f32 %v396, 1e-05
  %v413 = vadd.f32 %v397, 1e-05
  %v414 = vadd.f32 %v398, 1e-05
  %v415 = vadd.f32 %v399, 1e-05
  %v416 = vadd.f32 %v400, 1e-05
  %v417 = vadd.f32 %v401, 1e-05
  %v418 = vadd.f32 %v402, 1e-05
  %v419 = vadd.f32 %v403, 1e-05
  %v420 = vrsqrt.pop %v404
  %v421 = vrsqrt.pop %v405
  %v422 = vrsqrt.pop %v406
  %v423 = vrsqrt.pop %v407
  %v424 = vrsqrt.pop %v408
  %v425 = vrsqrt.pop %v409
  %v426 = vrsqrt.pop %v410
  %v427 = vrsqrt.pop %v411
  %v428 = vrsqrt.pop %v412
  %v429 = vrsqrt.pop %v413
  %v430 = vrsqrt.pop %v414
  %v431 = vrsqrt.pop %v415
  %v432 = vrsqrt.pop %v416
  %v433 = vrsqrt.pop %v417
  %v434 = vrsqrt.pop %v418
  %v435 = vrsqrt.pop %v419
  %v436 = vmul.f32 %v324, %v420
  %v437 = vmul.f32 %v325, %v421
  %v438 = vmul.f32 %v326, %v422
  %v439 = vmul.f32 %v327, %v423
  %v440 = vmul.f32 %v328, %v424
  %v441 = vmul.f32 %v329, %v425
  %v442 = vmul.f32 %v330, %v426
  %v443 = vmul.f32 %v331, %v427
  %v444 = vmul.f32 %v332, %v428
  %v445 = vmul.f32 %v333, %v429
  %v446 = vmul.f32 %v334, %v430
  %v447 = vmul.f32 %v335, %v431
  %v448 = vmul.f32 %v336, %v432
  %v449 = vmul.f32 %v337, %v433
  %v450 = vmul.f32 %v338, %v434
  %v451 = vmul.f32 %v339, %v435
  %v453 = vlaneseq
  %v454 = vshrl.u32 %v453, 7
  %v455 = vsub.s32 0, %v454
  %v456 = vrot.slane %v255, %v455
  %v458 = vmul.f32 %v436, %v456
  %v459 = vmul.f32 %v437, %v456
  %v460 = vmul.f32 %v438, %v456
  %v461 = vmul.f32 %v439, %v456
  %v462 = vmul.f32 %v440, %v456
  %v463 = vmul.f32 %v441, %v456
  %v464 = vmul.f32 %v442, %v456
  %v465 = vmul.f32 %v443, %v456
  %v466 = vmul.f32 %v444, %v456
  %v467 = vmul.f32 %v445, %v456
  %v468 = vmul.f32 %v446, %v456
  %v469 = vmul.f32 %v447, %v456
  %v470 = vmul.f32 %v448, %v456
  %v471 = vmul.f32 %v449, %v456
  %v472 = vmul.f32 %v450, %v456
  %v473 = vmul.f32 %v451, %v456
  %v475 = vlaneseq
  %v476 = vshrl.u32 %v475, 7
  %v477 = vsub.s32 0, %v476
  %v478 = vrot.slane %v256, %v477
  %v480 = vadd.f32 %v458, %v478
  %v481 = vadd.f32 %v459, %v478
  %v482 = vadd.f32 %v460, %v478
  %v483 = vadd.f32 %v461, %v478
  %v484 = vadd.f32 %v462, %v478
  %v485 = vadd.f32 %v463, %v478
  %v486 = vadd.f32 %v464, %v478
  %v487 = vadd.f32 %v465, %v478
  %v488 = vadd.f32 %v466, %v478
  %v489 = vadd.f32 %v467, %v478
  %v490 = vadd.f32 %v468, %v478
  %v491 = vadd.f32 %v469, %v478
  %v492 = vadd.f32 %v470, %v478
  %v493 = vadd.f32 %v471, %v478
  %v494 = vadd.f32 %v472, %v478
  %v495 = vadd.f32 %v473, %v478
  %v496 = vld [vmem:[%s5] sm:$0xf]
  %v497 = vld [vmem:[%s5 + $0x4] sm:$0xf]
  %v498 = vld [vmem:[%s5 + $0x8] sm:$0xf]
  %v499 = vld [vmem:[%s5 + $0xc] sm:$0xf]
  %v500 = vld [vmem:[%s5 + $0x10] sm:$0xf]
  %v501 = vld [vmem:[%s5 + $0x14] sm:$0xf]
  %v502 = vld [vmem:[%s5 + $0x18] sm:$0xf]
  %v503 = vld [vmem:[%s5 + $0x1c] sm:$0xf]
  %v504 = vld [vmem:[%s5 + $0x20] sm:$0xf]
  %v505 = vld [vmem:[%s5 + $0x24] sm:$0xf]
  %v506 = vld [vmem:[%s5 + $0x28] sm:$0xf]
  %v507 = vld [vmem:[%s5 + $0x2c] sm:$0xf]
  %v508 = vld [vmem:[%s5 + $0x30] sm:$0xf]
  %v509 = vld [vmem:[%s5 + $0x34] sm:$0xf]
  %v510 = vld [vmem:[%s5 + $0x38] sm:$0xf]
  %v511 = vld [vmem:[%s5 + $0x3c] sm:$0xf]
  %v512 = vld [vmem:[%s6] sm:$0x3]
  %v529 = vunpack.c.l.b16 %v496
  %v530 = vunpack.c.l.b16 %v497
  %v531 = vunpack.c.l.b16 %v498
  %v532 = vunpack.c.l.b16 %v499
  %v533 = vunpack.c.l.b16 %v500
  %v534 = vunpack.c.l.b16 %v501
  %v535 = vunpack.c.l.b16 %v502
  %v536 = vunpack.c.l.b16 %v503
  %v537 = vunpack.c.l.b16 %v504
  %v538 = vunpack.c.l.b16 %v505
  %v539 = vunpack.c.l.b16 %v506
  %v540 = vunpack.c.l.b16 %v507
  %v541 = vunpack.c.l.b16 %v508
  %v542 = vunpack.c.l.b16 %v509
  %v543 = vunpack.c.l.b16 %v510
  %v544 = vunpack.c.l.b16 %v511
  %v545 = vpack.c.b16 %v530, %v529
  %v546 = vpack.c.b16 %v532, %v531
  %v547 = vpack.c.b16 %v534, %v533
  %v548 = vpack.c.b16 %v536, %v535
  %v549 = vpack.c.b16 %v538, %v537
  %v550 = vpack.c.b16 %v540, %v539
  %v551 = vpack.c.b16 %v542, %v541
  %v552 = vpack.c.b16 %v544, %v543
  %vm553 = vcmask 31744
  %v555 = vsel %vm553, %v545, 0
  %v558 = vsel %vm553, %v546, 0
  %v561 = vsel %vm553, %v547, 0
  %v564 = vsel %vm553, %v548, 0
  %v567 = vsel %vm553, %v549, 0
  %v570 = vsel %vm553, %v550, 0
  %v573 = vsel %vm553, %v551, 0
  %v576 = vsel %vm553, %v552, 0
  %vm578 = vcmask 1041408
  %v580 = vsel %vm578, %v512, 0
  %582 = vmatprep.subr.bf16.mxu0 0
  %583 = vmatpush1.bf16.msra.mxu0 %v580
  %584 = vmatprep.subr.bf16.mxu0 0
  %585 = vmatpush1.bf16.msra.mxu0 0
  %586 = vmatprep.subr.bf16.mxu0 0
  %587 = vmatpush1.bf16.msra.mxu0 0
  %588 = vmatprep.subr.bf16.mxu0 0
  %589 = vmatpush1.bf16.msra.mxu0 0
  %590 = vmatprep.subr.bf16.mxu0 0
  %591 = vmatpush1.bf16.msra.mxu0 0
  %592 = vmatprep.subr.bf16.mxu0 0
  %593 = vmatpush1.bf16.msra.mxu0 0
  %594 = vmatprep.subr.bf16.mxu0 0
  %595 = vmatpush1.bf16.msra.mxu0 0
  %596 = vmatprep.subr.bf16.mxu0 0
  %597 = vmatpush1.bf16.msra.mxu0 0
  %598 = vmatprep.subr.bf16.mxu0 0
  %599 = vmatpush1.bf16.msra.mxu0 0
  %600 = vmatprep.subr.bf16.mxu0 0
  %601 = vmatpush1.bf16.msra.mxu0 0
  %602 = vmatprep.subr.bf16.mxu0 0
  %603 = vmatpush1.bf16.msra.mxu0 0
  %604 = vmatprep.subr.bf16.mxu0 0
  %605 = vmatpush1.bf16.msra.mxu0 0
  %606 = vmatprep.subr.bf16.mxu0 0
  %607 = vmatpush1.bf16.msra.mxu0 0
  %608 = vmatprep.subr.bf16.mxu0 0
  %609 = vmatpush1.bf16.msra.mxu0 0
  %610 = vmatprep.subr.bf16.mxu0 0
  %611 = vmatpush1.bf16.msra.mxu0 0
  %612 = vmatprep.subr.bf16.mxu0 0
  %613 = vmatpush1.bf16.msra.mxu0 0
  %614 = vmatprep.mubr.bf16.mxu0 0
  %615 = vmatmul.mubr.bf16.gmra.mrb[0].mxu0 %v555
  %v616 = vpop.f32.mrb[0].mxu0
  %v617 = vadd.f32 0.0, %v616
  %v618 = vpop.f32.mrb[0].mxu0
  %v619 = vpop.f32.mrb[0].mxu0
  %v620 = vadd.f32 0.0, %v619
  %v621 = vpop.f32.mrb[0].mxu0
  %622 = vmatprep.mubr.bf16.mxu0 0
  %623 = vmatmul.mubr.bf16.gmra.mrb[0].mxu0 %v558
  %v624 = vpop.f32.mrb[0].mxu0
  %v625 = vadd.f32 0.0, %v624
  %v626 = vpop.f32.mrb[0].mxu0
  %v627 = vpop.f32.mrb[0].mxu0
  %v628 = vadd.f32 0.0, %v627
  %v629 = vpop.f32.mrb[0].mxu0
  %630 = vmatprep.mubr.bf16.mxu0 0
  %631 = vmatmul.mubr.bf16.gmra.mrb[0].mxu0 %v561
  %v632 = vpop.f32.mrb[0].mxu0
  %v633 = vadd.f32 0.0, %v632
  %v634 = vpop.f32.mrb[0].mxu0
  %v635 = vpop.f32.mrb[0].mxu0
  %v636 = vadd.f32 0.0, %v635
  %v637 = vpop.f32.mrb[0].mxu0
  %638 = vmatprep.mubr.bf16.mxu0 0
  %639 = vmatmul.mubr.bf16.gmra.mrb[0].mxu0 %v564
  %v640 = vpop.f32.mrb[0].mxu0
  %v641 = vadd.f32 0.0, %v640
  %v642 = vpop.f32.mrb[0].mxu0
  %v643 = vpop.f32.mrb[0].mxu0
  %v644 = vadd.f32 0.0, %v643
  %v645 = vpop.f32.mrb[0].mxu0
  %646 = vmatprep.mubr.bf16.mxu0 0
  %647 = vmatmul.mubr.bf16.gmra.mrb[0].mxu0 %v567
  %v648 = vpop.f32.mrb[0].mxu0
  %v649 = vadd.f32 0.0, %v648
  %v650 = vpop.f32.mrb[0].mxu0
  %v651 = vpop.f32.mrb[0].mxu0
  %v652 = vadd.f32 0.0, %v651
  %v653 = vpop.f32.mrb[0].mxu0
  %654 = vmatprep.mubr.bf16.mxu0 0
  %655 = vmatmul.mubr.bf16.gmra.mrb[0].mxu0 %v570
  %v656 = vpop.f32.mrb[0].mxu0
  %v657 = vadd.f32 0.0, %v656
  %v658 = vpop.f32.mrb[0].mxu0
  %v659 = vpop.f32.mrb[0].mxu0
  %v660 = vadd.f32 0.0, %v659
  %v661 = vpop.f32.mrb[0].mxu0
  %662 = vmatprep.mubr.bf16.mxu0 0
  %663 = vmatmul.mubr.bf16.gmra.mrb[0].mxu0 %v573
  %v664 = vpop.f32.mrb[0].mxu0
  %v665 = vadd.f32 0.0, %v664
  %v666 = vpop.f32.mrb[0].mxu0
  %v667 = vpop.f32.mrb[0].mxu0
  %v668 = vadd.f32 0.0, %v667
  %v669 = vpop.f32.mrb[0].mxu0
  %670 = vmatprep.mubr.bf16.mxu0 0
  %671 = vmatmul.mubr.bf16.gmra.mrb[0].mxu0 %v576
  %v672 = vpop.f32.mrb[0].mxu0
  %v673 = vadd.f32 0.0, %v672
  %v674 = vpop.f32.mrb[0].mxu0
  %v675 = vpop.f32.mrb[0].mxu0
  %v676 = vadd.f32 0.0, %v675
  %v677 = vpop.f32.mrb[0].mxu0
  %678 = vdwg.mxu0
  %v679 = vadd.f32 %v480, %v617
  %v680 = vadd.f32 %v481, %v620
  %v681 = vadd.f32 %v482, %v625
  %v682 = vadd.f32 %v483, %v628
  %v683 = vadd.f32 %v484, %v633
  %v684 = vadd.f32 %v485, %v636
  %v685 = vadd.f32 %v486, %v641
  %v686 = vadd.f32 %v487, %v644
  %v687 = vadd.f32 %v488, %v649
  %v688 = vadd.f32 %v489, %v652
  %v689 = vadd.f32 %v490, %v657
  %v690 = vadd.f32 %v491, %v660
  %v691 = vadd.f32 %v492, %v665
  %v692 = vadd.f32 %v493, %v668
  %v693 = vadd.f32 %v494, %v673
  %v694 = vadd.f32 %v495, %v676
  %v695 = vld [vmem:[%s7] sm:$0x1]
  %v697 = vlaneseq
  %v698 = vshrl.u32 %v697, 7
  %v699 = vsub.s32 0, %v698
  %v700 = vrot.slane %v695, %v699
  %v702 = vadd.f32 %v679, %v700
  %v703 = vadd.f32 %v680, %v700
  %v704 = vadd.f32 %v681, %v700
  %v705 = vadd.f32 %v682, %v700
  %v706 = vadd.f32 %v683, %v700
  %v707 = vadd.f32 %v684, %v700
  %v708 = vadd.f32 %v685, %v700
  %v709 = vadd.f32 %v686, %v700
  %v710 = vadd.f32 %v687, %v700
  %v711 = vadd.f32 %v688, %v700
  %v712 = vadd.f32 %v689, %v700
  %v713 = vadd.f32 %v690, %v700
  %v714 = vadd.f32 %v691, %v700
  %v715 = vadd.f32 %v692, %v700
  %v716 = vadd.f32 %v693, %v700
  %v717 = vadd.f32 %v694, %v700
  %v718 = vmax.f32 %v702, 0.0
  %v719 = vmax.f32 %v703, 0.0
  %v720 = vmax.f32 %v704, 0.0
  %v721 = vmax.f32 %v705, 0.0
  %v722 = vmax.f32 %v706, 0.0
  %v723 = vmax.f32 %v707, 0.0
  %v724 = vmax.f32 %v708, 0.0
  %v725 = vmax.f32 %v709, 0.0
  %v726 = vmax.f32 %v710, 0.0
  %v727 = vmax.f32 %v711, 0.0
  %v728 = vmax.f32 %v712, 0.0
  %v729 = vmax.f32 %v713, 0.0
  %v730 = vmax.f32 %v714, 0.0
  %v731 = vmax.f32 %v715, 0.0
  %v732 = vmax.f32 %v716, 0.0
  %v733 = vmax.f32 %v717, 0.0
  %734 = vst [vmem:[%s8] sm:$0xff] %v718
  %735 = vst [vmem:[%s8 + $0x8] sm:$0xff] %v719
  %736 = vst [vmem:[%s8 + $0x10] sm:$0xff] %v720
  %737 = vst [vmem:[%s8 + $0x18] sm:$0xff] %v721
  %738 = vst [vmem:[%s8 + $0x20] sm:$0xff] %v722
  %739 = vst [vmem:[%s8 + $0x28] sm:$0xff] %v723
  %740 = vst [vmem:[%s8 + $0x30] sm:$0xff] %v724
  %741 = vst [vmem:[%s8 + $0x38] sm:$0xff] %v725
  %742 = vst [vmem:[%s8 + $0x40] sm:$0xff] %v726
  %743 = vst [vmem:[%s8 + $0x48] sm:$0xff] %v727
  %744 = vst [vmem:[%s8 + $0x50] sm:$0xff] %v728
  %745 = vst [vmem:[%s8 + $0x58] sm:$0xff] %v729
  %746 = vst [vmem:[%s8 + $0x60] sm:$0xff] %v730
  %747 = vst [vmem:[%s8 + $0x68] sm:$0xff] %v731
  %748 = vst [vmem:[%s8 + $0x70] sm:$0xff] %v732
  %749 = vst [vmem:[%s8 + $0x78] sm:$0xff] %v733
  // Predicated region
  $region34: #{_residual_block_impl.3} parent=0 // pred_check
    _
  $region35: #{_residual_block_impl.3} parent=0 // pred_check_branch
    %751 = sbr.rel (0) target = $region37
  $region36: #{_residual_block_impl.3} parent=0 // pred_region
    _
  $region37: #{_residual_block_impl.3} parent=0 // pred_fallthru
    _
  // Predicated region
  $region38: #{_residual_block_impl.3} parent=0 // pred_check
    _
  $region39: #{_residual_block_impl.3} parent=0 // pred_check_branch
    %753 = sbr.rel (0) target = $region41
  $region40: #{_residual_block_impl.3} parent=0 // pred_region
    _
  $region41: #{_residual_block_impl.3} parent=0 // pred_fallthru
    _

// kernel: _residual_block_impl.2
$region0: #{_residual_block_impl.2}
  #allocation0 [shape = 'u32[]', space=smem, size = 0x4, offset = 0x4, fixed_abs, tag = 'smem constant byte address 0x4 - core index']
  #allocation1 [shape = 'u32[144,128]{1,0:T(1,128)}', space=vmem, size = 0x12000, scoped, tag = 'internal scratch']
  %s0 = inlined_call_operand.vmem [shape: bf16[128,36], index: 0, kind: input, shape index: {}]
  %s1 = inlined_call_operand.vmem [shape: bf16[36,128], index: 1, kind: input, shape index: {}]
  %s2 = inlined_call_operand.vmem [shape: f32[1,128], index: 2, kind: input, shape index: {}]
  %s3 = inlined_call_operand.vmem [shape: f32[1,128], index: 3, kind: input, shape index: {}]
  %s4 = inlined_call_operand.vmem [shape: f32[1,128], index: 4, kind: input, shape index: {}]
  %s5 = inlined_call_operand.vmem [shape: bf16[128,128], index: 5, kind: output, shape index: {}]
  %s6 = sld [smem:[#allocation0]]
  $region30: #{_residual_block_impl.2} parent=0
    _
  %s8 = ssub.s32 1, %s6
  %s9 = scalar_select 0, %s8, %s6
  // Predicated region
  $region2: #{_residual_block_impl.2} parent=0 // pred_check
    _
  $region3: #{_residual_block_impl.2} parent=0 // pred_check_branch
    %11 = sbr.rel (0) target = $region5
  $region4: #{_residual_block_impl.2} parent=0 // pred_region
    _
  $region5: #{_residual_block_impl.2} parent=0 // pred_fallthru
    _
  // Predicated region
  $region6: #{_residual_block_impl.2} parent=0 // pred_check
    _
  $region7: #{_residual_block_impl.2} parent=0 // pred_check_branch
    %13 = sbr.rel (0) target = $region9
  $region8: #{_residual_block_impl.2} parent=0 // pred_region
    _
  $region9: #{_residual_block_impl.2} parent=0 // pred_fallthru
    _
  // Predicated region
  $region10: #{_residual_block_impl.2} parent=0 // pred_check
    _
  $region11: #{_residual_block_impl.2} parent=0 // pred_check_branch
    %15 = sbr.rel (0) target = $region13
  $region12: #{_residual_block_impl.2} parent=0 // pred_region
    _
  $region13: #{_residual_block_impl.2} parent=0 // pred_fallthru
    _
  // Predicated region
  $region14: #{_residual_block_impl.2} parent=0 // pred_check
    _
  $region15: #{_residual_block_impl.2} parent=0 // pred_check_branch
    %17 = sbr.rel (0) target = $region17
  $region16: #{_residual_block_impl.2} parent=0 // pred_region
    _
  $region17: #{_residual_block_impl.2} parent=0 // pred_fallthru
    _
  // Predicated region
  $region18: #{_residual_block_impl.2} parent=0 // pred_check
    _
  $region19: #{_residual_block_impl.2} parent=0 // pred_check_branch
    %19 = sbr.rel (0) target = $region21
  $region20: #{_residual_block_impl.2} parent=0 // pred_region
    _
  $region21: #{_residual_block_impl.2} parent=0 // pred_fallthru
    _
  %v21 = vld [vmem:[%s0] sm:$0xf]
  %v22 = vld [vmem:[%s0 + $0x4] sm:$0xf]
  %v23 = vld [vmem:[%s0 + $0x8] sm:$0xf]
  %v24 = vld [vmem:[%s0 + $0xc] sm:$0xf]
  %v25 = vld [vmem:[%s0 + $0x10] sm:$0xf]
  %v26 = vld [vmem:[%s0 + $0x14] sm:$0xf]
  %v27 = vld [vmem:[%s0 + $0x18] sm:$0xf]
  %v28 = vld [vmem:[%s0 + $0x1c] sm:$0xf]
  %v29 = vld [vmem:[%s0 + $0x20] sm:$0xf]
  %v30 = vld [vmem:[%s0 + $0x24] sm:$0xf]
  %v31 = vld [vmem:[%s0 + $0x28] sm:$0xf]
  %v32 = vld [vmem:[%s0 + $0x2c] sm:$0xf]
  %v33 = vld [vmem:[%s0 + $0x30] sm:$0xf]
  %v34 = vld [vmem:[%s0 + $0x34] sm:$0xf]
  %v35 = vld [vmem:[%s0 + $0x38] sm:$0xf]
  %v36 = vld [vmem:[%s0 + $0x3c] sm:$0xf]
  %v37 = vld [vmem:[%s1] sm:$0xf]
  %v38 = vld [vmem:[%s1 + $0x4] sm:$0xf]
  %v39 = vld [vmem:[%s1 + $0x8] sm:$0xf]
  %v40 = vld [vmem:[%s1 + $0xc] sm:$0xf]
  %v41 = vld [vmem:[%s1 + $0x10] sm:$0x3]
  %v42 = vld [vmem:[%s2] sm:$0x1]
  %v44 = vlaneseq
  %v45 = vshrl.u32 %v44, 7
  %v46 = vsub.s32 0, %v45
  %v47 = vrot.slane %v42, %v46
  %v65 = vunpack.c.l.b16 %v21
  %v66 = vunpack.c.l.b16 %v22
  %v67 = vunpack.c.l.b16 %v23
  %v68 = vunpack.c.l.b16 %v24
  %v69 = vunpack.c.l.b16 %v25
  %v70 = vunpack.c.l.b16 %v26
  %v71 = vunpack.c.l.b16 %v27
  %v72 = vunpack.c.l.b16 %v28
  %v73 = vunpack.c.l.b16 %v29
  %v74 = vunpack.c.l.b16 %v30
  %v75 = vunpack.c.l.b16 %v31
  %v76 = vunpack.c.l.b16 %v32
  %v77 = vunpack.c.l.b16 %v33
  %v78 = vunpack.c.l.b16 %v34
  %v79 = vunpack.c.l.b16 %v35
  %v80 = vunpack.c.l.b16 %v36
  %v81 = vpack.c.b16 %v66, %v65
  %v82 = vpack.c.b16 %v68, %v67
  %v83 = vpack.c.b16 %v70, %v69
  %v84 = vpack.c.b16 %v72, %v71
  %v85 = vpack.c.b16 %v74, %v73
  %v86 = vpack.c.b16 %v76, %v75
  %v87 = vpack.c.b16 %v78, %v77
  %v88 = vpack.c.b16 %v80, %v79
  %v94 = vunpack.c.l.b16 %v37
  %v95 = vunpack.c.l.b16 %v38
  %v96 = vunpack.c.l.b16 %v39
  %v97 = vunpack.c.l.b16 %v40
  %v98 = vunpack.c.l.b16 %v41
  %v99 = vpack.c.b16 %v95, %v94
  %v100 = vpack.c.b16 %v97, %v96
  %v101 = vpack.c.b16 %v98, %v98
  %vm104 = vcmask 293888
  %v106 = vsel %vm104, %v81, 0
  %v109 = vsel %vm104, %v82, 0
  %v112 = vsel %vm104, %v83, 0
  %v115 = vsel %vm104, %v84, 0
  %v118 = vsel %vm104, %v85, 0
  %v121 = vsel %vm104, %v86, 0
  %v124 = vsel %vm104, %v87, 0
  %v127 = vsel %vm104, %v88, 0
  %vm129 = vcmask 1041408
  %v131 = vsel %vm129, %v101, 0
  %133 = vmatprep.subr.bf16.mxu0 0
  %134 = vmatpush1.bf16.msra.mxu0 %v99
  %135 = vmatprep.subr.bf16.mxu0 0
  %136 = vmatpush1.bf16.msra.mxu0 %v100
  %137 = vmatprep.subr.bf16.mxu0 0
  %138 = vmatpush1.bf16.msra.mxu0 %v131
  %139 = vmatprep.subr.bf16.mxu0 0
  %140 = vmatpush1.bf16.msra.mxu0 0
  %141 = vmatprep.subr.bf16.mxu0 0
  %142 = vmatpush1.bf16.msra.mxu0 0
  %143 = vmatprep.subr.bf16.mxu0 0
  %144 = vmatpush1.bf16.msra.mxu0 0
  %145 = vmatprep.subr.bf16.mxu0 0
  %146 = vmatpush1.bf16.msra.mxu0 0
  %147 = vmatprep.subr.bf16.mxu0 0
  %148 = vmatpush1.bf16.msra.mxu0 0
  %149 = vmatprep.subr.bf16.mxu0 0
  %150 = vmatpush1.bf16.msra.mxu0 0
  %151 = vmatprep.subr.bf16.mxu0 0
  %152 = vmatpush1.bf16.msra.mxu0 0
  %153 = vmatprep.subr.bf16.mxu0 0
  %154 = vmatpush1.bf16.msra.mxu0 0
  %155 = vmatprep.subr.bf16.mxu0 0
  %156 = vmatpush1.bf16.msra.mxu0 0
  %157 = vmatprep.subr.bf16.mxu0 0
  %158 = vmatpush1.bf16.msra.mxu0 0
  %159 = vmatprep.subr.bf16.mxu0 0
  %160 = vmatpush1.bf16.msra.mxu0 0
  %161 = vmatprep.subr.bf16.mxu0 0
  %162 = vmatpush1.bf16.msra.mxu0 0
  %163 = vmatprep.subr.bf16.mxu0 0
  %164 = vmatpush1.bf16.msra.mxu0 0
  %165 = vmatprep.mubr.bf16.mxu0 0
  %166 = vmatmul.mubr.bf16.gmra.mrb[0].mxu0 %v106
  %v167 = vpop.f32.mrb[0].mxu0
  %v168 = vadd.f32 %v47, %v167
  %v169 = vpop.f32.mrb[0].mxu0
  %v170 = vpop.f32.mrb[0].mxu0
  %v171 = vadd.f32 %v47, %v170
  %v172 = vpop.f32.mrb[0].mxu0
  %173 = vmatprep.mubr.bf16.mxu0 0
  %174 = vmatmul.mubr.bf16.gmra.mrb[0].mxu0 %v109
  %v175 = vpop.f32.mrb[0].mxu0
  %v176 = vadd.f32 %v47, %v175
  %v177 = vpop.f32.mrb[0].mxu0
  %v178 = vpop.f32.mrb[0].mxu0
  %v179 = vadd.f32 %v47, %v178
  %v180 = vpop.f32.mrb[0].mxu0
  %181 = vmatprep.mubr.bf16.mxu0 0
  %182 = vmatmul.mubr.bf16.gmra.mrb[0].mxu0 %v112
  %v183 = vpop.f32.mrb[0].mxu0
  %v184 = vadd.f32 %v47, %v183
  %v185 = vpop.f32.mrb[0].mxu0
  %v186 = vpop.f32.mrb[0].mxu0
  %v187 = vadd.f32 %v47, %v186
  %v188 = vpop.f32.mrb[0].mxu0
  %189 = vmatprep.mubr.bf16.mxu0 0
  %190 = vmatmul.mubr.bf16.gmra.mrb[0].mxu0 %v115
  %v191 = vpop.f32.mrb[0].mxu0
  %v192 = vadd.f32 %v47, %v191
  %v193 = vpop.f32.mrb[0].mxu0
  %v194 = vpop.f32.mrb[0].mxu0
  %v195 = vadd.f32 %v47, %v194
  %v196 = vpop.f32.mrb[0].mxu0
  %197 = vmatprep.mubr.bf16.mxu0 0
  %198 = vmatmul.mubr.bf16.gmra.mrb[0].mxu0 %v118
  %v199 = vpop.f32.mrb[0].mxu0
  %v200 = vadd.f32 %v47, %v199
  %v201 = vpop.f32.mrb[0].mxu0
  %v202 = vpop.f32.mrb[0].mxu0
  %v203 = vadd.f32 %v47, %v202
  %v204 = vpop.f32.mrb[0].mxu0
  %205 = vmatprep.mubr.bf16.mxu0 0
  %206 = vmatmul.mubr.bf16.gmra.mrb[0].mxu0 %v121
  %v207 = vpop.f32.mrb[0].mxu0
  %v208 = vadd.f32 %v47, %v207
  %v209 = vpop.f32.mrb[0].mxu0
  %v210 = vpop.f32.mrb[0].mxu0
  %v211 = vadd.f32 %v47, %v210
  %v212 = vpop.f32.mrb[0].mxu0
  %213 = vmatprep.mubr.bf16.mxu0 0
  %214 = vmatmul.mubr.bf16.gmra.mrb[0].mxu0 %v124
  %v215 = vpop.f32.mrb[0].mxu0
  %v216 = vadd.f32 %v47, %v215
  %v217 = vpop.f32.mrb[0].mxu0
  %v218 = vpop.f32.mrb[0].mxu0
  %v219 = vadd.f32 %v47, %v218
  %v220 = vpop.f32.mrb[0].mxu0
  %221 = vmatprep.mubr.bf16.mxu0 0
  %222 = vmatmul.mubr.bf16.gmra.mrb[0].mxu0 %v127
  %v223 = vpop.f32.mrb[0].mxu0
  %v224 = vadd.f32 %v47, %v223
  %v225 = vpop.f32.mrb[0].mxu0
  %v226 = vpop.f32.mrb[0].mxu0
  %v227 = vadd.f32 %v47, %v226
  %v228 = vpop.f32.mrb[0].mxu0
  %229 = vdwg.mxu0
  %v230 = vld [vmem:[%s3] sm:$0x1]
  %v231 = vld [vmem:[%s4] sm:$0x1]
  %v232 = vlaneseq
  %v233 = vand.u32 %v232, 127
  %vm234 = vcmp.lt.s32.totalorder %v233, 8
  %235 = vadd.xlane.f32.xlu0 %v168
  %v236 = vpop.xlane.xlu0 %235
  %237 = vadd.xlane.f32.xlu0 %v171
  %v238 = vpop.xlane.xlu0 %237
  %239 = vadd.xlane.f32.xlu0 %v176
  %v240 = vpop.xlane.xlu0 %239
  %241 = vadd.xlane.f32.xlu0 %v179
  %v242 = vpop.xlane.xlu0 %241
  %243 = vadd.xlane.f32.xlu0 %v184
  %v244 = vpop.xlane.xlu0 %243
  %245 = vadd.xlane.f32.xlu0 %v187
  %v246 = vpop.xlane.xlu0 %245
  %247 = vadd.xlane.f32.xlu0 %v192
  %v248 = vpop.xlane.xlu0 %247
  %249 = vadd.xlane.f32.xlu0 %v195
  %v250 = vpop.xlane.xlu0 %249
  %251 = vadd.xlane.f32.xlu0 %v200
  %v252 = vpop.xlane.xlu0 %251
  %253 = vadd.xlane.f32.xlu0 %v203
  %v254 = vpop.xlane.xlu0 %253
  %255 = vadd.xlane.f32.xlu0 %v208
  %v256 = vpop.xlane.xlu0 %255
  %257 = vadd.xlane.f32.xlu0 %v211
  %v258 = vpop.xlane.xlu0 %257
  %259 = vadd.xlane.f32.xlu0 %v216
  %v260 = vpop.xlane.xlu0 %259
  %261 = vadd.xlane.f32.xlu0 %v219
  %v262 = vpop.xlane.xlu0 %261
  %263 = vadd.xlane.f32.xlu0 %v224
  %v264 = vpop.xlane.xlu0 %263
  %265 = vadd.xlane.f32.xlu0 %v227
  %v266 = vpop.xlane.xlu0 %265
  %v267 = vmul.f32 %v236, 0.125
  %v268 = vmul.f32 %v238, 0.125
  %v269 = vmul.f32 %v240, 0.125
  %v270 = vmul.f32 %v242, 0.125
  %v271 = vmul.f32 %v244, 0.125
  %v272 = vmul.f32 %v246, 0.125
  %v273 = vmul.f32 %v248, 0.125
  %v274 = vmul.f32 %v250, 0.125
  %v275 = vmul.f32 %v252, 0.125
  %v276 = vmul.f32 %v254, 0.125
  %v277 = vmul.f32 %v256, 0.125
  %v278 = vmul.f32 %v258, 0.125
  %v279 = vmul.f32 %v260, 0.125
  %v280 = vmul.f32 %v262, 0.125
  %v281 = vmul.f32 %v264, 0.125
  %v282 = vmul.f32 %v266, 0.125
  %v283 = vsub.f32 %v168, %v267
  %v284 = vsub.f32 %v171, %v268
  %v285 = vsub.f32 %v176, %v269
  %v286 = vsub.f32 %v179, %v270
  %v287 = vsub.f32 %v184, %v271
  %v288 = vsub.f32 %v187, %v272
  %v289 = vsub.f32 %v192, %v273
  %v290 = vsub.f32 %v195, %v274
  %v291 = vsub.f32 %v200, %v275
  %v292 = vsub.f32 %v203, %v276
  %v293 = vsub.f32 %v208, %v277
  %v294 = vsub.f32 %v211, %v278
  %v295 = vsub.f32 %v216, %v279
  %v296 = vsub.f32 %v219, %v280
  %v297 = vsub.f32 %v224, %v281
  %v298 = vsub.f32 %v227, %v282
  %v299 = vsel %vm234, %v283, 0.0
  %v300 = vsel %vm234, %v284, 0.0
  %v301 = vsel %vm234, %v285, 0.0
  %v302 = vsel %vm234, %v286, 0.0
  %v303 = vsel %vm234, %v287, 0.0
  %v304 = vsel %vm234, %v288, 0.0
  %v305 = vsel %vm234, %v289, 0.0
  %v306 = vsel %vm234, %v290, 0.0
  %v307 = vsel %vm234, %v291, 0.0
  %v308 = vsel %vm234, %v292, 0.0
  %v309 = vsel %vm234, %v293, 0.0
  %v310 = vsel %vm234, %v294, 0.0
  %v311 = vsel %vm234, %v295, 0.0
  %v312 = vsel %vm234, %v296, 0.0
  %v313 = vsel %vm234, %v297, 0.0
  %v314 = vsel %vm234, %v298, 0.0
  %v315 = vmul.f32 %v299, %v299
  %v316 = vmul.f32 %v300, %v300
  %v317 = vmul.f32 %v301, %v301
  %v318 = vmul.f32 %v302, %v302
  %v319 = vmul.f32 %v303, %v303
  %v320 = vmul.f32 %v304, %v304
  %v321 = vmul.f32 %v305, %v305
  %v322 = vmul.f32 %v306, %v306
  %v323 = vmul.f32 %v307, %v307
  %v324 = vmul.f32 %v308, %v308
  %v325 = vmul.f32 %v309, %v309
  %v326 = vmul.f32 %v310, %v310
  %v327 = vmul.f32 %v311, %v311
  %v328 = vmul.f32 %v312, %v312
  %v329 = vmul.f32 %v313, %v313
  %v330 = vmul.f32 %v314, %v314
  %331 = vadd.xlane.f32.xlu0 %v315
  %v332 = vpop.xlane.xlu0 %331
  %333 = vadd.xlane.f32.xlu0 %v316
  %v334 = vpop.xlane.xlu0 %333
  %335 = vadd.xlane.f32.xlu0 %v317
  %v336 = vpop.xlane.xlu0 %335
  %337 = vadd.xlane.f32.xlu0 %v318
  %v338 = vpop.xlane.xlu0 %337
  %339 = vadd.xlane.f32.xlu0 %v319
  %v340 = vpop.xlane.xlu0 %339
  %341 = vadd.xlane.f32.xlu0 %v320
  %v342 = vpop.xlane.xlu0 %341
  %343 = vadd.xlane.f32.xlu0 %v321
  %v344 = vpop.xlane.xlu0 %343
  %345 = vadd.xlane.f32.xlu0 %v322
  %v346 = vpop.xlane.xlu0 %345
  %347 = vadd.xlane.f32.xlu0 %v323
  %v348 = vpop.xlane.xlu0 %347
  %349 = vadd.xlane.f32.xlu0 %v324
  %v350 = vpop.xlane.xlu0 %349
  %351 = vadd.xlane.f32.xlu0 %v325
  %v352 = vpop.xlane.xlu0 %351
  %353 = vadd.xlane.f32.xlu0 %v326
  %v354 = vpop.xlane.xlu0 %353
  %355 = vadd.xlane.f32.xlu0 %v327
  %v356 = vpop.xlane.xlu0 %355
  %357 = vadd.xlane.f32.xlu0 %v328
  %v358 = vpop.xlane.xlu0 %357
  %359 = vadd.xlane.f32.xlu0 %v329
  %v360 = vpop.xlane.xlu0 %359
  %361 = vadd.xlane.f32.xlu0 %v330
  %v362 = vpop.xlane.xlu0 %361
  %v363 = vmul.f32 %v332, 0.125
  %v364 = vmul.f32 %v334, 0.125
  %v365 = vmul.f32 %v336, 0.125
  %v366 = vmul.f32 %v338, 0.125
  %v367 = vmul.f32 %v340, 0.125
  %v368 = vmul.f32 %v342, 0.125
  %v369 = vmul.f32 %v344, 0.125
  %v370 = vmul.f32 %v346, 0.125
  %v371 = vmul.f32 %v348, 0.125
  %v372 = vmul.f32 %v350, 0.125
  %v373 = vmul.f32 %v352, 0.125
  %v374 = vmul.f32 %v354, 0.125
  %v375 = vmul.f32 %v356, 0.125
  %v376 = vmul.f32 %v358, 0.125
  %v377 = vmul.f32 %v360, 0.125
  %v378 = vmul.f32 %v362, 0.125
  %v379 = vadd.f32 %v363, 1e-05
  %v380 = vadd.f32 %v364, 1e-05
  %v381 = vadd.f32 %v365, 1e-05
  %v382 = vadd.f32 %v366, 1e-05
  %v383 = vadd.f32 %v367, 1e-05
  %v384 = vadd.f32 %v368, 1e-05
  %v385 = vadd.f32 %v369, 1e-05
  %v386 = vadd.f32 %v370, 1e-05
  %v387 = vadd.f32 %v371, 1e-05
  %v388 = vadd.f32 %v372, 1e-05
  %v389 = vadd.f32 %v373, 1e-05
  %v390 = vadd.f32 %v374, 1e-05
  %v391 = vadd.f32 %v375, 1e-05
  %v392 = vadd.f32 %v376, 1e-05
  %v393 = vadd.f32 %v377, 1e-05
  %v394 = vadd.f32 %v378, 1e-05
  %v395 = vrsqrt.pop %v379
  %v396 = vrsqrt.pop %v380
  %v397 = vrsqrt.pop %v381
  %v398 = vrsqrt.pop %v382
  %v399 = vrsqrt.pop %v383
  %v400 = vrsqrt.pop %v384
  %v401 = vrsqrt.pop %v385
  %v402 = vrsqrt.pop %v386
  %v403 = vrsqrt.pop %v387
  %v404 = vrsqrt.pop %v388
  %v405 = vrsqrt.pop %v389
  %v406 = vrsqrt.pop %v390
  %v407 = vrsqrt.pop %v391
  %v408 = vrsqrt.pop %v392
  %v409 = vrsqrt.pop %v393
  %v410 = vrsqrt.pop %v394
  %v411 = vmul.f32 %v299, %v395
  %v412 = vmul.f32 %v300, %v396
  %v413 = vmul.f32 %v301, %v397
  %v414 = vmul.f32 %v302, %v398
  %v415 = vmul.f32 %v303, %v399
  %v416 = vmul.f32 %v304, %v400
  %v417 = vmul.f32 %v305, %v401
  %v418 = vmul.f32 %v306, %v402
  %v419 = vmul.f32 %v307, %v403
  %v420 = vmul.f32 %v308, %v404
  %v421 = vmul.f32 %v309, %v405
  %v422 = vmul.f32 %v310, %v406
  %v423 = vmul.f32 %v311, %v407
  %v424 = vmul.f32 %v312, %v408
  %v425 = vmul.f32 %v313, %v409
  %v426 = vmul.f32 %v314, %v410
  %v428 = vlaneseq
  %v429 = vshrl.u32 %v428, 7
  %v430 = vsub.s32 0, %v429
  %v431 = vrot.slane %v230, %v430
  %v433 = vmul.f32 %v411, %v431
  %v434 = vmul.f32 %v412, %v431
  %v435 = vmul.f32 %v413, %v431
  %v436 = vmul.f32 %v414, %v431
  %v437 = vmul.f32 %v415, %v431
  %v438 = vmul.f32 %v416, %v431
  %v439 = vmul.f32 %v417, %v431
  %v440 = vmul.f32 %v418, %v431
  %v441 = vmul.f32 %v419, %v431
  %v442 = vmul.f32 %v420, %v431
  %v443 = vmul.f32 %v421, %v431
  %v444 = vmul.f32 %v422, %v431
  %v445 = vmul.f32 %v423, %v431
  %v446 = vmul.f32 %v424, %v431
  %v447 = vmul.f32 %v425, %v431
  %v448 = vmul.f32 %v426, %v431
  %v450 = vlaneseq
  %v451 = vshrl.u32 %v450, 7
  %v452 = vsub.s32 0, %v451
  %v453 = vrot.slane %v231, %v452
  %v455 = vadd.f32 %v433, %v453
  %v456 = vadd.f32 %v434, %v453
  %v457 = vadd.f32 %v435, %v453
  %v458 = vadd.f32 %v436, %v453
  %v459 = vadd.f32 %v437, %v453
  %v460 = vadd.f32 %v438, %v453
  %v461 = vadd.f32 %v439, %v453
  %v462 = vadd.f32 %v440, %v453
  %v463 = vadd.f32 %v441, %v453
  %v464 = vadd.f32 %v442, %v453
  %v465 = vadd.f32 %v443, %v453
  %v466 = vadd.f32 %v444, %v453
  %v467 = vadd.f32 %v445, %v453
  %v468 = vadd.f32 %v446, %v453
  %v469 = vadd.f32 %v447, %v453
  %v470 = vadd.f32 %v448, %v453
  %v471 = vmax.f32 %v455, 0.0
  %v472 = vmax.f32 %v456, 0.0
  %v473 = vmax.f32 %v457, 0.0
  %v474 = vmax.f32 %v458, 0.0
  %v475 = vmax.f32 %v459, 0.0
  %v476 = vmax.f32 %v460, 0.0
  %v477 = vmax.f32 %v461, 0.0
  %v478 = vmax.f32 %v462, 0.0
  %v479 = vmax.f32 %v463, 0.0
  %v480 = vmax.f32 %v464, 0.0
  %v481 = vmax.f32 %v465, 0.0
  %v482 = vmax.f32 %v466, 0.0
  %v483 = vmax.f32 %v467, 0.0
  %v484 = vmax.f32 %v468, 0.0
  %v485 = vmax.f32 %v469, 0.0
  %v486 = vmax.f32 %v470, 0.0
  %v487 = vpack.c.bf16 %v472, %v471
  %v488 = vpack.c.bf16 %v474, %v473
  %v489 = vpack.c.bf16 %v476, %v475
  %v490 = vpack.c.bf16 %v478, %v477
  %v491 = vpack.c.bf16 %v480, %v479
  %v492 = vpack.c.bf16 %v482, %v481
  %v493 = vpack.c.bf16 %v484, %v483
  %v494 = vpack.c.bf16 %v486, %v485
  %v503 = vunpack.c.l.b16 %v487
  %v504 = vunpack.c.h.b16 %v487
  %v505 = vunpack.c.l.b16 %v488
  %v506 = vunpack.c.h.b16 %v488
  %v507 = vunpack.c.l.b16 %v489
  %v508 = vunpack.c.h.b16 %v489
  %v509 = vunpack.c.l.b16 %v490
  %v510 = vunpack.c.h.b16 %v490
  %v511 = vunpack.c.l.b16 %v491
  %v512 = vunpack.c.h.b16 %v491
  %v513 = vunpack.c.l.b16 %v492
  %v514 = vunpack.c.h.b16 %v492
  %v515 = vunpack.c.l.b16 %v493
  %v516 = vunpack.c.h.b16 %v493
  %v517 = vunpack.c.l.b16 %v494
  %v518 = vunpack.c.h.b16 %v494
  %v519 = vpack.c.b16 %v503, %v503
  %v520 = vpack.c.b16 %v504, %v504
  %v521 = vpack.c.b16 %v505, %v505
  %v522 = vpack.c.b16 %v506, %v506
  %v523 = vpack.c.b16 %v507, %v507
  %v524 = vpack.c.b16 %v508, %v508
  %v525 = vpack.c.b16 %v509, %v509
  %v526 = vpack.c.b16 %v510, %v510
  %v527 = vpack.c.b16 %v511, %v511
  %v528 = vpack.c.b16 %v512, %v512
  %v529 = vpack.c.b16 %v513, %v513
  %v530 = vpack.c.b16 %v514, %v514
  %v531 = vpack.c.b16 %v515, %v515
  %v532 = vpack.c.b16 %v516, %v516
  %v533 = vpack.c.b16 %v517, %v517
  %v534 = vpack.c.b16 %v518, %v518
  %551 = vst [vmem:[%s5] sm:$0xf] %v519
  %552 = vst [vmem:[%s5 + $0x4] sm:$0xf] %v520
  %553 = vst [vmem:[%s5 + $0x8] sm:$0xf] %v521
  %554 = vst [vmem:[%s5 + $0xc] sm:$0xf] %v522
  %555 = vst [vmem:[%s5 + $0x10] sm:$0xf] %v523
  %556 = vst [vmem:[%s5 + $0x14] sm:$0xf] %v524
  %557 = vst [vmem:[%s5 + $0x18] sm:$0xf] %v525
  %558 = vst [vmem:[%s5 + $0x1c] sm:$0xf] %v526
  %559 = vst [vmem:[%s5 + $0x20] sm:$0xf] %v527
  %560 = vst [vmem:[%s5 + $0x24] sm:$0xf] %v528
  %561 = vst [vmem:[%s5 + $0x28] sm:$0xf] %v529
  %562 = vst [vmem:[%s5 + $0x2c] sm:$0xf] %v530
  %563 = vst [vmem:[%s5 + $0x30] sm:$0xf] %v531
  %564 = vst [vmem:[%s5 + $0x34] sm:$0xf] %v532
  %565 = vst [vmem:[%s5 + $0x38] sm:$0xf] %v533
  %566 = vst [vmem:[%s5 + $0x3c] sm:$0xf] %v534
  // Predicated region
  $region22: #{_residual_block_impl.2} parent=0 // pred_check
    _
  $region23: #{_residual_block_impl.2} parent=0 // pred_check_branch
    %568 = sbr.rel (0) target = $region25
  $region24: #{_residual_block_impl.2} parent=0 // pred_region
    _
  $region25: #{_residual_block_impl.2} parent=0 // pred_fallthru
    _
  // Predicated region
  $region26: #{_residual_block_impl.2} parent=0 // pred_check
    _
  $region27: #{_residual_block_impl.2} parent=0 // pred_check_branch
    %570 = sbr.rel (0) target = $region29
  $region28: #{_residual_block_impl.2} parent=0 // pred_region
    _
  $region29: #{_residual_block_impl.2} parent=0 // pred_fallthru
    _

</llo_original>
